<compile_context>
chip_gen: v5e
topology: v5e:2x2
jax: 0.10.0
libtpu: 0.0.40
codegen_flags: <defaults>
</compile_context>

<pallas_src>
import functools

import jax
import jax.numpy as jnp
import numpy as np
from jax.experimental import pallas as pl
from jax.experimental.pallas import tpu as pltpu

EPS = 1e-5
CDT = jnp.bfloat16  # MXU input dtype (halves HBM/VMEM traffic; accums stay f32)


def _finalize_bn(st_ref, fold_ref, g_ref, b_ref, count):
    """Turn accumulated [sum; sumsq] (per (w,c) lane) into per-lane
    [scale; shift] so that y_norm = y*scale + shift.  Done in place."""
    s = st_ref[0:1, :]
    q = st_ref[1:2, :]
    # Fold the W lane-groups with a small MXU matmul: fold[w'*C+c, w*C+c] = 1.
    mu = jnp.dot(s, fold_ref[...], preferred_element_type=jnp.float32) / count
    ms = jnp.dot(q, fold_ref[...], preferred_element_type=jnp.float32) / count
    var = jnp.maximum(ms - mu * mu, 0.0)          # one-pass moments, clamp >= 0
    rsig = jax.lax.rsqrt(var + EPS)
    scale = rsig * g_ref[...]
    shift = b_ref[...] - mu * scale
    st_ref[0:1, :] = scale
    st_ref[1:2, :] = shift


def bottleneck_kernel(N, H, W,
                      x_ref, w1_ref, w2_ref, w3_ref, fm_ref, fo_ref,
                      g1_ref, b1_ref, g2_ref, b2_ref, g3_ref, b3_ref,
                      o_ref,
                      xp_ref, y2_ref, y3_ref, st1_ref, st2_ref, st3_ref):
    p = pl.program_id(0)        # phase 0..3
    n = pl.program_id(1)        # image index
    count = float(N * H * W)    # samples per channel for batch statistics

    # ---- init (very first grid step) ----
    @pl.when((p == 0) & (n == 0))
    def _init():
        xp_ref[...] = jnp.zeros_like(xp_ref)       # zero rows double as H padding
        st1_ref[...] = jnp.zeros_like(st1_ref)
        st2_ref[...] = jnp.zeros_like(st2_ref)
        st3_ref[...] = jnp.zeros_like(st3_ref)

    # ---- phase 0: conv1 (1x1) per image + bn1 moment accumulation ----
    @pl.when(p == 0)
    def _phase0():
        y1 = jnp.dot(x_ref[...], w1_ref[...], preferred_element_type=jnp.float32)
        st1_ref[0:1, :] += jnp.sum(y1, axis=0, keepdims=True)
        st1_ref[1:2, :] += jnp.sum(y1 * y1, axis=0, keepdims=True)
        xp_ref[n, 1:H + 1, :] = y1                 # raw; normalized in phase 1

    @pl.when((p == 1) & (n == 0))
    def _fin1():
        _finalize_bn(st1_ref, fm_ref, g1_ref, b1_ref, count)

    # ---- phase 1: bn1+relu in place (pad rows stay zero), 3x3 conv as three
    #      block-Toeplitz matmuls, bn2 moment accumulation ----
    @pl.when(p == 1)
    def _phase1():
        sc = st1_ref[0:1, :]
        sh = st1_ref[1:2, :]
        y1n = jnp.maximum(xp_ref[n, 1:H + 1, :] * sc + sh, 0.0)
        xp_ref[n, 1:H + 1, :] = y1n
        y2 = jnp.dot(xp_ref[n, 0:H, :].astype(CDT), w2_ref[0],
                     preferred_element_type=jnp.float32)
        y2 += jnp.dot(y1n.astype(CDT), w2_ref[1],
                      preferred_element_type=jnp.float32)
        y2 += jnp.dot(xp_ref[n, 2:H + 2, :].astype(CDT), w2_ref[2],
                      preferred_element_type=jnp.float32)
        st2_ref[0:1, :] += jnp.sum(y2, axis=0, keepdims=True)
        st2_ref[1:2, :] += jnp.sum(y2 * y2, axis=0, keepdims=True)
        y2_ref[n, :, :] = y2

    @pl.when((p == 2) & (n == 0))
    def _fin2():
        _finalize_bn(st2_ref, fm_ref, g2_ref, b2_ref, count)

    # ---- phase 2: bn2+relu, conv3 (1x1), bn3 moment accumulation ----
    @pl.when(p == 2)
    def _phase2():
        sc = st2_ref[0:1, :]
        sh = st2_ref[1:2, :]
        y2n = jnp.maximum(y2_ref[n, :, :] * sc + sh, 0.0)
        y3 = jnp.dot(y2n.astype(CDT), w3_ref[...],
                     preferred_element_type=jnp.float32)
        st3_ref[0:1, :] += jnp.sum(y3, axis=0, keepdims=True)
        st3_ref[1:2, :] += jnp.sum(y3 * y3, axis=0, keepdims=True)
        y3_ref[n, :, :] = y3

    @pl.when((p == 3) & (n == 0))
    def _fin3():
        _finalize_bn(st3_ref, fo_ref, g3_ref, b3_ref, count)

    # ---- phase 3: bn3, residual add (identity = x, same layout), relu ----
    @pl.when(p == 3)
    def _phase3():
        sc = st3_ref[0:1, :]
        sh = st3_ref[1:2, :]
        y = y3_ref[n, :, :] * sc + sh + x_ref[...].astype(jnp.float32)
        o_ref[...] = jnp.maximum(y, 0.0)


def bottleneck_pallas(x_nchw, p):
    N, Cin, H, W = x_nchw.shape
    w1 = jnp.transpose(p["w1"][:, :, 0, 0])              # (Cin, Cm)
    w2 = jnp.transpose(p["w2"], (2, 3, 1, 0))             # (kh, kw, Cm, Cm) HWIO
    w3 = jnp.transpose(p["w3"][:, :, 0, 0])               # (Cm, Cout)
    Cm, Cout = w1.shape[1], w3.shape[1]
    assert Cout == Cin, "downsample=None requires in_channels == 4*intermediate"

    # Lane-folded layout: rows = (n, h), lanes = (w, c)  -> lane-dense stores.
    x_rows = jnp.transpose(x_nchw, (0, 2, 3, 1)).reshape(N * H, W * Cin).astype(CDT)

    eye_w = jnp.eye(W, dtype=jnp.float32)
    # 1x1 convs become block-diagonal matmuls on the lane-folded layout.
    w1b = jnp.kron(eye_w, w1.astype(jnp.float32)).astype(CDT)        # (W*Cin, W*Cm)
    w3b = jnp.kron(eye_w, w3.astype(jnp.float32)).astype(CDT)        # (W*Cm, W*Cout)
    # 3x3 conv: one block-Toeplitz matrix per kh tap; W-boundary zero padding
    # is folded into the truncated Toeplitz structure.
    w2t = jnp.stack([
        sum(jnp.kron(jnp.eye(W, k=1 - kw, dtype=jnp.float32),
                     w2[kh, kw].astype(jnp.float32)) for kw in range(3))
        for kh in range(3)]).astype(CDT)                              # (3, W*Cm, W*Cm)
    # Folding matrices: sum the W lane-groups -> per-channel, replicated per lane.
    fold_m = jnp.kron(jnp.ones((W, W), jnp.float32), jnp.eye(Cm, dtype=jnp.float32))
    fold_o = jnp.kron(jnp.ones((W, W), jnp.float32), jnp.eye(Cout, dtype=jnp.float32))

    def lane_tile(v):   # (C,) -> (1, W*C), replicated per w group (f32)
        return jnp.tile(v.astype(jnp.float32), W).reshape(1, -1)

    g1t, b1t = lane_tile(p["g1"]), lane_tile(p["b1"])
    g2t, b2t = lane_tile(p["g2"]), lane_tile(p["b2"])
    g3t, b3t = lane_tile(p["g3"]), lane_tile(p["b3"])

    kernel = functools.partial(bottleneck_kernel, N, H, W)

    def x_map(ph, n):     # image block needed in phase 0 (conv1) and 3 (identity)
        return (jnp.where(ph == 0, n, jnp.where(ph == 3, n, 0)), 0)

    def out_map(ph, n):   # only written (and written back) in phase 3
        return (jnp.where(ph == 3, n, 0), 0)

    const2 = lambda ph, n: (0, 0)
    const3 = lambda ph, n: (0, 0, 0)

    out = pl.pallas_call(
        kernel,
        out_shape=jax.ShapeDtypeStruct((N * H, W * Cout), jnp.float32),
        grid_spec=pltpu.PrefetchScalarGridSpec(
            num_scalar_prefetch=0,
            grid=(4, N),                    # (phase, image)
            in_specs=[
                pl.BlockSpec((H, W * Cin), x_map),
                pl.BlockSpec((W * Cin, W * Cm), const2),
                pl.BlockSpec((3, W * Cm, W * Cm), const3),
                pl.BlockSpec((W * Cm, W * Cout), const2),
                pl.BlockSpec((W * Cm, W * Cm), const2),
                pl.BlockSpec((W * Cout, W * Cout), const2),
                pl.BlockSpec((1, W * Cm), const2),
                pl.BlockSpec((1, W * Cm), const2),
                pl.BlockSpec((1, W * Cm), const2),
                pl.BlockSpec((1, W * Cm), const2),
                pl.BlockSpec((1, W * Cout), const2),
                pl.BlockSpec((1, W * Cout), const2),
            ],
            out_specs=pl.BlockSpec((H, W * Cout), out_map),
            scratch_shapes=[
                pltpu.VMEM((N, H + 2, W * Cm), jnp.float32),   # H-padded y1 / y1n
                pltpu.VMEM((N, H, W * Cm), jnp.float32),       # raw conv2 output
                pltpu.VMEM((N, H, W * Cout), jnp.float32),     # raw conv3 output
                pltpu.VMEM((2, W * Cm), jnp.float32),          # bn1 [sum;sumsq]->[scale;shift]
                pltpu.VMEM((2, W * Cm), jnp.float32),          # bn2
                pltpu.VMEM((2, W * Cout), jnp.float32),        # bn3
            ]),
        compiler_params=pltpu.CompilerParams(
            # Both axes carry sequential state (BN statistics / in-place
            # scratch reuse), so they must stay "arbitrary".
            dimension_semantics=("arbitrary", "arbitrary"),
            vmem_limit_bytes=32 * 1024 * 1024),
    )(x_rows, w1b, w2t, w3b, fold_m, fold_o, g1t, b1t, g2t, b2t, g3t, b3t)

    return jnp.transpose(out.reshape(N, H, W, Cout), (0, 3, 1, 2))


# ------------------------- Pure-JAX reference --------------------------------
def bottleneck_ref(x_nchw, p):
    x = jnp.transpose(x_nchw, (0, 2, 3, 1)).astype(jnp.float32)

    def conv(v, w_oihw, pad=0):
        w = jnp.transpose(w_oihw, (2, 3, 1, 0))  # HWIO
        return jax.lax.conv_general_dilated(
            v, w, (1, 1), [(pad, pad), (pad, pad)],
            dimension_numbers=("NHWC", "HWIO", "NHWC"),
            precision=jax.lax.Precision.HIGHEST)

    def bn(v, g, b):
        mu = jnp.mean(v, axis=(0, 1, 2), keepdims=True)
        var = jnp.mean((v - mu) ** 2, axis=(0, 1, 2), keepdims=True)
        return (v - mu) * jax.lax.rsqrt(var + EPS) * g + b

    identity = x
    y = jax.nn.relu(bn(conv(x, p["w1"]), p["g1"], p["b1"]))
    y = jax.nn.relu(bn(conv(y, p["w2"], pad=1), p["g2"], p["b2"]))
    y = bn(conv(y, p["w3"]), p["g3"], p["b3"])
    y = jax.nn.relu(y + identity)
    return jnp.transpose(y, (0, 3, 1, 2))


if __name__ == "__main__":
    key = jax.random.PRNGKey(0)
    kx, k1, k2, k3 = jax.random.split(key, 4)

    N, H, W = 2, 16, 16
    intermediate = 4
    expansion = 4
    Cin = intermediate * expansion        # 16 so the residual add is valid (downsample=None)
    Cm = intermediate
    Cout = intermediate * expansion

    x = jax.random.normal(kx, (N, Cin, H, W), jnp.float32)

    params = {
        # PyTorch conv weight layout: (Cout, Cin, kH, kW), bias=False
        "w1": 0.1 * jax.random.normal(k1, (Cm, Cin, 1, 1), jnp.float32),
        "g1": jnp.ones((Cm,), jnp.float32),  "b1": jnp.zeros((Cm,), jnp.float32),
        "w2": 0.1 * jax.random.normal(k2, (Cm, Cm, 3, 3), jnp.float32),
        "g2": jnp.ones((Cm,), jnp.float32),  "b2": jnp.zeros((Cm,), jnp.float32),
        "w3": 0.1 * jax.random.normal(k3, (Cout, Cm, 1, 1), jnp.float32),
        "g3": jnp.ones((Cout,), jnp.float32), "b3": jnp.zeros((Cout,), jnp.float32),
    }

    out = bottleneck_pallas(x, params)
    out = jax.block_until_ready(out)

    ref = bottleneck_ref(x, params)
    assert out.shape == (N, Cout, H, W), out.shape
    err = float(np.max(np.abs(np.asarray(out) - np.asarray(ref))))
    # Tolerance accounts for bf16 MXU inputs (per perf guidance); BN stats,
    # rsqrt and the residual math are kept in f32 inside the kernel.
    assert np.allclose(np.asarray(out), np.asarray(ref), rtol=2e-2, atol=3e-2), (
        "mismatch vs reference: max abs err = %g" % err)

    print("KERNEL_OK")
</pallas_src>

<mosaic_0001>
module attributes {stable_mosaic.version = 11 : i64} {
  func.func @bottleneck_kernel(%arg0: i32, %arg1: i32, %arg2: memref<16x256xbf16, #tpu.memory_space<vmem>>, %arg3: memref<256x64xbf16, #tpu.memory_space<vmem>>, %arg4: memref<3x64x64xbf16, #tpu.memory_space<vmem>>, %arg5: memref<64x256xbf16, #tpu.memory_space<vmem>>, %arg6: memref<64x64xf32, #tpu.memory_space<vmem>>, %arg7: memref<256x256xf32, #tpu.memory_space<vmem>>, %arg8: memref<1x64xf32, #tpu.memory_space<vmem>>, %arg9: memref<1x64xf32, #tpu.memory_space<vmem>>, %arg10: memref<1x64xf32, #tpu.memory_space<vmem>>, %arg11: memref<1x64xf32, #tpu.memory_space<vmem>>, %arg12: memref<1x256xf32, #tpu.memory_space<vmem>>, %arg13: memref<1x256xf32, #tpu.memory_space<vmem>>, %arg14: memref<16x256xf32, #tpu.memory_space<vmem>>, %arg15: memref<2x18x64xf32, #tpu.memory_space<vmem>>, %arg16: memref<2x16x64xf32, #tpu.memory_space<vmem>>, %arg17: memref<2x16x256xf32, #tpu.memory_space<vmem>>, %arg18: memref<2x64xf32, #tpu.memory_space<vmem>>, %arg19: memref<2x64xf32, #tpu.memory_space<vmem>>, %arg20: memref<2x256xf32, #tpu.memory_space<vmem>>) attributes {dimension_semantics = [#tpu.dimension_semantics<arbitrary>, #tpu.dimension_semantics<arbitrary>], iteration_bounds = array<i64: 4, 2>, scalar_prefetch = 0 : i64, scratch_operands = 6 : i64, tpu.core_type = #tpu.core_type<tc>, window_params = [{transform_indices = @transform_0, window_bounds = array<i64: 16, 256>}, {pipeline_mode = #tpu.pipeline_mode<synchronous>, transform_indices = @transform_1, window_bounds = array<i64: 256, 64>}, {pipeline_mode = #tpu.pipeline_mode<synchronous>, transform_indices = @transform_2, window_bounds = array<i64: 3, 64, 64>}, {pipeline_mode = #tpu.pipeline_mode<synchronous>, transform_indices = @transform_3, window_bounds = array<i64: 64, 256>}, {pipeline_mode = #tpu.pipeline_mode<synchronous>, transform_indices = @transform_4, window_bounds = array<i64: 64, 64>}, {pipeline_mode = #tpu.pipeline_mode<synchronous>, transform_indices = @transform_5, window_bounds = array<i64: 256, 256>}, {pipeline_mode = #tpu.pipeline_mode<synchronous>, transform_indices = @transform_6, window_bounds = array<i64: 1, 64>}, {pipeline_mode = #tpu.pipeline_mode<synchronous>, transform_indices = @transform_7, window_bounds = array<i64: 1, 64>}, {pipeline_mode = #tpu.pipeline_mode<synchronous>, transform_indices = @transform_8, window_bounds = array<i64: 1, 64>}, {pipeline_mode = #tpu.pipeline_mode<synchronous>, transform_indices = @transform_9, window_bounds = array<i64: 1, 64>}, {pipeline_mode = #tpu.pipeline_mode<synchronous>, transform_indices = @transform_10, window_bounds = array<i64: 1, 256>}, {pipeline_mode = #tpu.pipeline_mode<synchronous>, transform_indices = @transform_11, window_bounds = array<i64: 1, 256>}, {transform_indices = @transform_12, window_bounds = array<i64: 16, 256>}]} {
    %c0_i32 = arith.constant 0 : i32
    %0 = arith.cmpi eq, %arg0, %c0_i32 : i32
    %c0_i32_0 = arith.constant 0 : i32
    %1 = arith.cmpi eq, %arg1, %c0_i32_0 : i32
    %2 = arith.andi %0, %1 : i1
    %3 = arith.extui %2 : i1 to i32
    %c0_i32_1 = arith.constant 0 : i32
    %4 = arith.cmpi ne, %3, %c0_i32_1 : i32
    scf.if %4 {
      %cst = arith.constant 0.000000e+00 : f32
      %32 = vector.broadcast %cst : f32 to vector<2x18x64xf32>
      %c0 = arith.constant 0 : index
      %c0_16 = arith.constant 0 : index
      %c0_17 = arith.constant 0 : index
      %33 = vector.load %arg15[%c0, %c0_16, %c0_17] : memref<2x18x64xf32, #tpu.memory_space<vmem>>, vector<2x18x64xf32>
      tpu.vector_store %arg15[%c0, %c0_16, %c0_17], %32 {strides = array<i32>} : memref<2x18x64xf32, #tpu.memory_space<vmem>>, vector<2x18x64xf32>,
      %cst_18 = arith.constant 0.000000e+00 : f32
      %34 = vector.broadcast %cst_18 : f32 to vector<2x64xf32>
      %c0_19 = arith.constant 0 : index
      %c0_20 = arith.constant 0 : index
      %35 = vector.load %arg18[%c0_19, %c0_20] : memref<2x64xf32, #tpu.memory_space<vmem>>, vector<2x64xf32>
      tpu.vector_store %arg18[%c0_19, %c0_20], %34 {strides = array<i32>} : memref<2x64xf32, #tpu.memory_space<vmem>>, vector<2x64xf32>,
      %cst_21 = arith.constant 0.000000e+00 : f32
      %36 = vector.broadcast %cst_21 : f32 to vector<2x64xf32>
      %c0_22 = arith.constant 0 : index
      %c0_23 = arith.constant 0 : index
      %37 = vector.load %arg19[%c0_22, %c0_23] : memref<2x64xf32, #tpu.memory_space<vmem>>, vector<2x64xf32>
      tpu.vector_store %arg19[%c0_22, %c0_23], %36 {strides = array<i32>} : memref<2x64xf32, #tpu.memory_space<vmem>>, vector<2x64xf32>,
      %cst_24 = arith.constant 0.000000e+00 : f32
      %38 = vector.broadcast %cst_24 : f32 to vector<2x256xf32>
      %c0_25 = arith.constant 0 : index
      %c0_26 = arith.constant 0 : index
      %39 = vector.load %arg20[%c0_25, %c0_26] : memref<2x256xf32, #tpu.memory_space<vmem>>, vector<2x256xf32>
      tpu.vector_store %arg20[%c0_25, %c0_26], %38 {strides = array<i32>} : memref<2x256xf32, #tpu.memory_space<vmem>>, vector<2x256xf32>,
    } else {
    }
    %c0_i32_2 = arith.constant 0 : i32
    %5 = arith.cmpi eq, %arg0, %c0_i32_2 : i32
    %6 = arith.extui %5 : i1 to i32
    %c0_i32_3 = arith.constant 0 : i32
    %7 = arith.cmpi ne, %6, %c0_i32_3 : i32
    scf.if %7 {
      %c0 = arith.constant 0 : index
      %c0_16 = arith.constant 0 : index
      %32 = vector.load %arg2[%c0, %c0_16] : memref<16x256xbf16, #tpu.memory_space<vmem>>, vector<16x256xbf16>
      %c0_17 = arith.constant 0 : index
      %c0_18 = arith.constant 0 : index
      %33 = vector.load %arg3[%c0_17, %c0_18] : memref<256x64xbf16, #tpu.memory_space<vmem>>, vector<256x64xbf16>
      %cst = arith.constant dense<0.000000e+00> : vector<16x64xf32>
      %34 = tpu.matmul %32, %33, %cst {dimension_numbers = #tpu.dot_dimension_numbers<[1], [0], [0], [1], [0, 0, 1, 1], [], []>} : vector<16x256xbf16>, vector<256x64xbf16>, vector<16x64xf32> -> vector<16x64xf32>
      %c0_19 = arith.constant 0 : index
      %c0_20 = arith.constant 0 : index
      %35 = vector.load %arg18[%c0_19, %c0_20] : memref<2x64xf32, #tpu.memory_space<vmem>>, vector<1x64xf32>
      %cst_21 = arith.constant dense<0.000000e+00> : vector<64xf32>
      %36 = vector.multi_reduction <add>, %34, %cst_21 [0] : vector<16x64xf32> to vector<64xf32>
      %37 = vector.shape_cast %36 : vector<64xf32> to vector<1x64xf32>
      %38 = arith.addf %35, %37 : vector<1x64xf32>
      %c0_22 = arith.constant 0 : index
      %c0_23 = arith.constant 0 : index
      %39 = vector.load %arg18[%c0_22, %c0_23] : memref<2x64xf32, #tpu.memory_space<vmem>>, vector<1x64xf32>
      tpu.vector_store %arg18[%c0_22, %c0_23], %38 {strides = array<i32>} : memref<2x64xf32, #tpu.memory_space<vmem>>, vector<1x64xf32>,
      %c1 = arith.constant 1 : index
      %c0_24 = arith.constant 0 : index
      %40 = vector.load %arg18[%c1, %c0_24] : memref<2x64xf32, #tpu.memory_space<vmem>>, vector<1x64xf32>
      %41 = arith.mulf %34, %34 : vector<16x64xf32>
      %cst_25 = arith.constant dense<0.000000e+00> : vector<64xf32>
      %42 = vector.multi_reduction <add>, %41, %cst_25 [0] : vector<16x64xf32> to vector<64xf32>
      %43 = vector.shape_cast %42 : vector<64xf32> to vector<1x64xf32>
      %44 = arith.addf %40, %43 : vector<1x64xf32>
      %c1_26 = arith.constant 1 : index
      %c0_27 = arith.constant 0 : index
      %45 = vector.load %arg18[%c1_26, %c0_27] : memref<2x64xf32, #tpu.memory_space<vmem>>, vector<1x64xf32>
      tpu.vector_store %arg18[%c1_26, %c0_27], %44 {strides = array<i32>} : memref<2x64xf32, #tpu.memory_space<vmem>>, vector<1x64xf32>,
      %46 = arith.index_cast %arg1 : i32 to index
      %c1_28 = arith.constant 1 : index
      %c0_29 = arith.constant 0 : index
      %47 = vector.load %arg15[%46, %c1_28, %c0_29] : memref<2x18x64xf32, #tpu.memory_space<vmem>>, vector<1x16x64xf32>
      %48 = vector.shape_cast %47 : vector<1x16x64xf32> to vector<16x64xf32>
      %49 = vector.shape_cast %34 : vector<16x64xf32> to vector<1x16x64xf32>
      tpu.vector_store %arg15[%46, %c1_28, %c0_29], %49 {strides = array<i32>} : memref<2x18x64xf32, #tpu.memory_space<vmem>>, vector<1x16x64xf32>,
    } else {
    }
    %c1_i32 = arith.constant 1 : i32
    %8 = arith.cmpi eq, %arg0, %c1_i32 : i32
    %c0_i32_4 = arith.constant 0 : i32
    %9 = arith.cmpi eq, %arg1, %c0_i32_4 : i32
    %10 = arith.andi %8, %9 : i1
    %11 = arith.extui %10 : i1 to i32
    %c0_i32_5 = arith.constant 0 : i32
    %12 = arith.cmpi ne, %11, %c0_i32_5 : i32
    scf.if %12 {
      %c0 = arith.constant 0 : index
      %c0_16 = arith.constant 0 : index
      %32 = vector.load %arg18[%c0, %c0_16] : memref<2x64xf32, #tpu.memory_space<vmem>>, vector<1x64xf32>
      %c1 = arith.constant 1 : index
      %c0_17 = arith.constant 0 : index
      %33 = vector.load %arg18[%c1, %c0_17] : memref<2x64xf32, #tpu.memory_space<vmem>>, vector<1x64xf32>
      %c0_18 = arith.constant 0 : index
      %c0_19 = arith.constant 0 : index
      %34 = vector.load %arg6[%c0_18, %c0_19] : memref<64x64xf32, #tpu.memory_space<vmem>>, vector<64x64xf32>
      %cst = arith.constant dense<0.000000e+00> : vector<1x64xf32>
      %35 = tpu.matmul %32, %34, %cst {dimension_numbers = #tpu.dot_dimension_numbers<[1], [0], [0], [1], [0, 0, 1, 1], [], []>} : vector<1x64xf32>, vector<64x64xf32>, vector<1x64xf32> -> vector<1x64xf32>
      %cst_20 = arith.constant 5.120000e+02 : f32
      %36 = vector.broadcast %cst_20 : f32 to vector<1x64xf32>
      %37 = arith.divf %35, %36 : vector<1x64xf32>
      %c0_21 = arith.constant 0 : index
      %c0_22 = arith.constant 0 : index
      %38 = vector.load %arg6[%c0_21, %c0_22] : memref<64x64xf32, #tpu.memory_space<vmem>>, vector<64x64xf32>
      %cst_23 = arith.constant dense<0.000000e+00> : vector<1x64xf32>
      %39 = tpu.matmul %33, %38, %cst_23 {dimension_numbers = #tpu.dot_dimension_numbers<[1], [0], [0], [1], [0, 0, 1, 1], [], []>} : vector<1x64xf32>, vector<64x64xf32>, vector<1x64xf32> -> vector<1x64xf32>
      %cst_24 = arith.constant 5.120000e+02 : f32
      %40 = vector.broadcast %cst_24 : f32 to vector<1x64xf32>
      %41 = arith.divf %39, %40 : vector<1x64xf32>
      %42 = arith.mulf %37, %37 : vector<1x64xf32>
      %43 = arith.subf %41, %42 : vector<1x64xf32>
      %cst_25 = arith.constant 0.000000e+00 : f32
      %44 = vector.broadcast %cst_25 : f32 to vector<1x64xf32>
      %45 = arith.maximumf %43, %44 : vector<1x64xf32>
      %cst_26 = arith.constant 9.99999974E-6 : f32
      %46 = vector.broadcast %cst_26 : f32 to vector<1x64xf32>
      %47 = arith.addf %45, %46 : vector<1x64xf32>
      %48 = math.rsqrt %47 : vector<1x64xf32>
      %c0_27 = arith.constant 0 : index
      %c0_28 = arith.constant 0 : index
      %49 = vector.load %arg8[%c0_27, %c0_28] : memref<1x64xf32, #tpu.memory_space<vmem>>, vector<1x64xf32>
      %50 = arith.mulf %48, %49 : vector<1x64xf32>
      %c0_29 = arith.constant 0 : index
      %c0_30 = arith.constant 0 : index
      %51 = vector.load %arg9[%c0_29, %c0_30] : memref<1x64xf32, #tpu.memory_space<vmem>>, vector<1x64xf32>
      %52 = arith.mulf %37, %50 : vector<1x64xf32>
      %53 = arith.subf %51, %52 : vector<1x64xf32>
      %c0_31 = arith.constant 0 : index
      %c0_32 = arith.constant 0 : index
      %54 = vector.load %arg18[%c0_31, %c0_32] : memref<2x64xf32, #tpu.memory_space<vmem>>, vector<1x64xf32>
      tpu.vector_store %arg18[%c0_31, %c0_32], %50 {strides = array<i32>} : memref<2x64xf32, #tpu.memory_space<vmem>>, vector<1x64xf32>,
      %c1_33 = arith.constant 1 : index
      %c0_34 = arith.constant 0 : index
      %55 = vector.load %arg18[%c1_33, %c0_34] : memref<2x64xf32, #tpu.memory_space<vmem>>, vector<1x64xf32>
      tpu.vector_store %arg18[%c1_33, %c0_34], %53 {strides = array<i32>} : memref<2x64xf32, #tpu.memory_space<vmem>>, vector<1x64xf32>,
    } else {
    }
    %c1_i32_6 = arith.constant 1 : i32
    %13 = arith.cmpi eq, %arg0, %c1_i32_6 : i32
    %14 = arith.extui %13 : i1 to i32
    %c0_i32_7 = arith.constant 0 : i32
    %15 = arith.cmpi ne, %14, %c0_i32_7 : i32
    scf.if %15 {
      %c0 = arith.constant 0 : index
      %c0_16 = arith.constant 0 : index
      %32 = vector.load %arg18[%c0, %c0_16] : memref<2x64xf32, #tpu.memory_space<vmem>>, vector<1x64xf32>
      %c1 = arith.constant 1 : index
      %c0_17 = arith.constant 0 : index
      %33 = vector.load %arg18[%c1, %c0_17] : memref<2x64xf32, #tpu.memory_space<vmem>>, vector<1x64xf32>
      %34 = arith.index_cast %arg1 : i32 to index
      %c1_18 = arith.constant 1 : index
      %c0_19 = arith.constant 0 : index
      %35 = vector.load %arg15[%34, %c1_18, %c0_19] : memref<2x18x64xf32, #tpu.memory_space<vmem>>, vector<1x16x64xf32>
      %36 = vector.shape_cast %35 : vector<1x16x64xf32> to vector<16x64xf32>
      %37 = vector.broadcast %32 : vector<1x64xf32> to vector<16x64xf32>
      %38 = arith.mulf %36, %37 : vector<16x64xf32>
      %39 = vector.broadcast %33 : vector<1x64xf32> to vector<16x64xf32>
      %40 = arith.addf %38, %39 : vector<16x64xf32>
      %cst = arith.constant 0.000000e+00 : f32
      %41 = vector.broadcast %cst : f32 to vector<16x64xf32>
      %42 = arith.maximumf %40, %41 : vector<16x64xf32>
      %43 = arith.index_cast %arg1 : i32 to index
      %c1_20 = arith.constant 1 : index
      %c0_21 = arith.constant 0 : index
      %44 = vector.load %arg15[%43, %c1_20, %c0_21] : memref<2x18x64xf32, #tpu.memory_space<vmem>>, vector<1x16x64xf32>
      %45 = vector.shape_cast %44 : vector<1x16x64xf32> to vector<16x64xf32>
      %46 = vector.shape_cast %42 : vector<16x64xf32> to vector<1x16x64xf32>
      tpu.vector_store %arg15[%43, %c1_20, %c0_21], %46 {strides = array<i32>} : memref<2x18x64xf32, #tpu.memory_space<vmem>>, vector<1x16x64xf32>,
      %47 = arith.index_cast %arg1 : i32 to index
      %c0_22 = arith.constant 0 : index
      %c0_23 = arith.constant 0 : index
      %48 = vector.load %arg15[%47, %c0_22, %c0_23] : memref<2x18x64xf32, #tpu.memory_space<vmem>>, vector<1x16x64xf32>
      %49 = vector.shape_cast %48 : vector<1x16x64xf32> to vector<16x64xf32>
      %50 = arith.truncf %49 : vector<16x64xf32> to vector<16x64xbf16>
      %c0_24 = arith.constant 0 : index
      %c0_25 = arith.constant 0 : index
      %c0_26 = arith.constant 0 : index
      %51 = vector.load %arg4[%c0_24, %c0_25, %c0_26] : memref<3x64x64xbf16, #tpu.memory_space<vmem>>, vector<1x64x64xbf16>
      %52 = vector.shape_cast %51 : vector<1x64x64xbf16> to vector<64x64xbf16>
      %cst_27 = arith.constant dense<0.000000e+00> : vector<16x64xf32>
      %53 = tpu.matmul %50, %52, %cst_27 {dimension_numbers = #tpu.dot_dimension_numbers<[1], [0], [0], [1], [0, 0, 1, 1], [], []>} : vector<16x64xbf16>, vector<64x64xbf16>, vector<16x64xf32> -> vector<16x64xf32>
      %54 = arith.truncf %42 : vector<16x64xf32> to vector<16x64xbf16>
      %c1_28 = arith.constant 1 : index
      %c0_29 = arith.constant 0 : index
      %c0_30 = arith.constant 0 : index
      %55 = vector.load %arg4[%c1_28, %c0_29, %c0_30] : memref<3x64x64xbf16, #tpu.memory_space<vmem>>, vector<1x64x64xbf16>
      %56 = vector.shape_cast %55 : vector<1x64x64xbf16> to vector<64x64xbf16>
      %cst_31 = arith.constant dense<0.000000e+00> : vector<16x64xf32>
      %57 = tpu.matmul %54, %56, %cst_31 {dimension_numbers = #tpu.dot_dimension_numbers<[1], [0], [0], [1], [0, 0, 1, 1], [], []>} : vector<16x64xbf16>, vector<64x64xbf16>, vector<16x64xf32> -> vector<16x64xf32>
      %58 = arith.addf %53, %57 : vector<16x64xf32>
      %59 = arith.index_cast %arg1 : i32 to index
      %c2 = arith.constant 2 : index
      %c0_32 = arith.constant 0 : index
      %60 = vector.load %arg15[%59, %c2, %c0_32] : memref<2x18x64xf32, #tpu.memory_space<vmem>>, vector<1x16x64xf32>
      %61 = vector.shape_cast %60 : vector<1x16x64xf32> to vector<16x64xf32>
      %62 = arith.truncf %61 : vector<16x64xf32> to vector<16x64xbf16>
      %c2_33 = arith.constant 2 : index
      %c0_34 = arith.constant 0 : index
      %c0_35 = arith.constant 0 : index
      %63 = vector.load %arg4[%c2_33, %c0_34, %c0_35] : memref<3x64x64xbf16, #tpu.memory_space<vmem>>, vector<1x64x64xbf16>
      %64 = vector.shape_cast %63 : vector<1x64x64xbf16> to vector<64x64xbf16>
      %cst_36 = arith.constant dense<0.000000e+00> : vector<16x64xf32>
      %65 = tpu.matmul %62, %64, %cst_36 {dimension_numbers = #tpu.dot_dimension_numbers<[1], [0], [0], [1], [0, 0, 1, 1], [], []>} : vector<16x64xbf16>, vector<64x64xbf16>, vector<16x64xf32> -> vector<16x64xf32>
      %66 = arith.addf %58, %65 : vector<16x64xf32>
      %c0_37 = arith.constant 0 : index
      %c0_38 = arith.constant 0 : index
      %67 = vector.load %arg19[%c0_37, %c0_38] : memref<2x64xf32, #tpu.memory_space<vmem>>, vector<1x64xf32>
      %cst_39 = arith.constant dense<0.000000e+00> : vector<64xf32>
      %68 = vector.multi_reduction <add>, %66, %cst_39 [0] : vector<16x64xf32> to vector<64xf32>
      %69 = vector.shape_cast %68 : vector<64xf32> to vector<1x64xf32>
      %70 = arith.addf %67, %69 : vector<1x64xf32>
      %c0_40 = arith.constant 0 : index
      %c0_41 = arith.constant 0 : index
      %71 = vector.load %arg19[%c0_40, %c0_41] : memref<2x64xf32, #tpu.memory_space<vmem>>, vector<1x64xf32>
      tpu.vector_store %arg19[%c0_40, %c0_41], %70 {strides = array<i32>} : memref<2x64xf32, #tpu.memory_space<vmem>>, vector<1x64xf32>,
      %c1_42 = arith.constant 1 : index
      %c0_43 = arith.constant 0 : index
      %72 = vector.load %arg19[%c1_42, %c0_43] : memref<2x64xf32, #tpu.memory_space<vmem>>, vector<1x64xf32>
      %73 = arith.mulf %66, %66 : vector<16x64xf32>
      %cst_44 = arith.constant dense<0.000000e+00> : vector<64xf32>
      %74 = vector.multi_reduction <add>, %73, %cst_44 [0] : vector<16x64xf32> to vector<64xf32>
      %75 = vector.shape_cast %74 : vector<64xf32> to vector<1x64xf32>
      %76 = arith.addf %72, %75 : vector<1x64xf32>
      %c1_45 = arith.constant 1 : index
      %c0_46 = arith.constant 0 : index
      %77 = vector.load %arg19[%c1_45, %c0_46] : memref<2x64xf32, #tpu.memory_space<vmem>>, vector<1x64xf32>
      tpu.vector_store %arg19[%c1_45, %c0_46], %76 {strides = array<i32>} : memref<2x64xf32, #tpu.memory_space<vmem>>, vector<1x64xf32>,
      %78 = arith.index_cast %arg1 : i32 to index
      %c0_47 = arith.constant 0 : index
      %c0_48 = arith.constant 0 : index
      %79 = vector.load %arg16[%78, %c0_47, %c0_48] : memref<2x16x64xf32, #tpu.memory_space<vmem>>, vector<1x16x64xf32>
      %80 = vector.shape_cast %79 : vector<1x16x64xf32> to vector<16x64xf32>
      %81 = vector.shape_cast %66 : vector<16x64xf32> to vector<1x16x64xf32>
      tpu.vector_store %arg16[%78, %c0_47, %c0_48], %81 {strides = array<i32>} : memref<2x16x64xf32, #tpu.memory_space<vmem>>, vector<1x16x64xf32>,
    } else {
    }
    %c2_i32 = arith.constant 2 : i32
    %16 = arith.cmpi eq, %arg0, %c2_i32 : i32
    %c0_i32_8 = arith.constant 0 : i32
    %17 = arith.cmpi eq, %arg1, %c0_i32_8 : i32
    %18 = arith.andi %16, %17 : i1
    %19 = arith.extui %18 : i1 to i32
    %c0_i32_9 = arith.constant 0 : i32
    %20 = arith.cmpi ne, %19, %c0_i32_9 : i32
    scf.if %20 {
      %c0 = arith.constant 0 : index
      %c0_16 = arith.constant 0 : index
      %32 = vector.load %arg19[%c0, %c0_16] : memref<2x64xf32, #tpu.memory_space<vmem>>, vector<1x64xf32>
      %c1 = arith.constant 1 : index
      %c0_17 = arith.constant 0 : index
      %33 = vector.load %arg19[%c1, %c0_17] : memref<2x64xf32, #tpu.memory_space<vmem>>, vector<1x64xf32>
      %c0_18 = arith.constant 0 : index
      %c0_19 = arith.constant 0 : index
      %34 = vector.load %arg6[%c0_18, %c0_19] : memref<64x64xf32, #tpu.memory_space<vmem>>, vector<64x64xf32>
      %cst = arith.constant dense<0.000000e+00> : vector<1x64xf32>
      %35 = tpu.matmul %32, %34, %cst {dimension_numbers = #tpu.dot_dimension_numbers<[1], [0], [0], [1], [0, 0, 1, 1], [], []>} : vector<1x64xf32>, vector<64x64xf32>, vector<1x64xf32> -> vector<1x64xf32>
      %cst_20 = arith.constant 5.120000e+02 : f32
      %36 = vector.broadcast %cst_20 : f32 to vector<1x64xf32>
      %37 = arith.divf %35, %36 : vector<1x64xf32>
      %c0_21 = arith.constant 0 : index
      %c0_22 = arith.constant 0 : index
      %38 = vector.load %arg6[%c0_21, %c0_22] : memref<64x64xf32, #tpu.memory_space<vmem>>, vector<64x64xf32>
      %cst_23 = arith.constant dense<0.000000e+00> : vector<1x64xf32>
      %39 = tpu.matmul %33, %38, %cst_23 {dimension_numbers = #tpu.dot_dimension_numbers<[1], [0], [0], [1], [0, 0, 1, 1], [], []>} : vector<1x64xf32>, vector<64x64xf32>, vector<1x64xf32> -> vector<1x64xf32>
      %cst_24 = arith.constant 5.120000e+02 : f32
      %40 = vector.broadcast %cst_24 : f32 to vector<1x64xf32>
      %41 = arith.divf %39, %40 : vector<1x64xf32>
      %42 = arith.mulf %37, %37 : vector<1x64xf32>
      %43 = arith.subf %41, %42 : vector<1x64xf32>
      %cst_25 = arith.constant 0.000000e+00 : f32
      %44 = vector.broadcast %cst_25 : f32 to vector<1x64xf32>
      %45 = arith.maximumf %43, %44 : vector<1x64xf32>
      %cst_26 = arith.constant 9.99999974E-6 : f32
      %46 = vector.broadcast %cst_26 : f32 to vector<1x64xf32>
      %47 = arith.addf %45, %46 : vector<1x64xf32>
      %48 = math.rsqrt %47 : vector<1x64xf32>
      %c0_27 = arith.constant 0 : index
      %c0_28 = arith.constant 0 : index
      %49 = vector.load %arg10[%c0_27, %c0_28] : memref<1x64xf32, #tpu.memory_space<vmem>>, vector<1x64xf32>
      %50 = arith.mulf %48, %49 : vector<1x64xf32>
      %c0_29 = arith.constant 0 : index
      %c0_30 = arith.constant 0 : index
      %51 = vector.load %arg11[%c0_29, %c0_30] : memref<1x64xf32, #tpu.memory_space<vmem>>, vector<1x64xf32>
      %52 = arith.mulf %37, %50 : vector<1x64xf32>
      %53 = arith.subf %51, %52 : vector<1x64xf32>
      %c0_31 = arith.constant 0 : index
      %c0_32 = arith.constant 0 : index
      %54 = vector.load %arg19[%c0_31, %c0_32] : memref<2x64xf32, #tpu.memory_space<vmem>>, vector<1x64xf32>
      tpu.vector_store %arg19[%c0_31, %c0_32], %50 {strides = array<i32>} : memref<2x64xf32, #tpu.memory_space<vmem>>, vector<1x64xf32>,
      %c1_33 = arith.constant 1 : index
      %c0_34 = arith.constant 0 : index
      %55 = vector.load %arg19[%c1_33, %c0_34] : memref<2x64xf32, #tpu.memory_space<vmem>>, vector<1x64xf32>
      tpu.vector_store %arg19[%c1_33, %c0_34], %53 {strides = array<i32>} : memref<2x64xf32, #tpu.memory_space<vmem>>, vector<1x64xf32>,
    } else {
    }
    %c2_i32_10 = arith.constant 2 : i32
    %21 = arith.cmpi eq, %arg0, %c2_i32_10 : i32
    %22 = arith.extui %21 : i1 to i32
    %c0_i32_11 = arith.constant 0 : i32
    %23 = arith.cmpi ne, %22, %c0_i32_11 : i32
    scf.if %23 {
      %c0 = arith.constant 0 : index
      %c0_16 = arith.constant 0 : index
      %32 = vector.load %arg19[%c0, %c0_16] : memref<2x64xf32, #tpu.memory_space<vmem>>, vector<1x64xf32>
      %c1 = arith.constant 1 : index
      %c0_17 = arith.constant 0 : index
      %33 = vector.load %arg19[%c1, %c0_17] : memref<2x64xf32, #tpu.memory_space<vmem>>, vector<1x64xf32>
      %34 = arith.index_cast %arg1 : i32 to index
      %c0_18 = arith.constant 0 : index
      %c0_19 = arith.constant 0 : index
      %35 = vector.load %arg16[%34, %c0_18, %c0_19] : memref<2x16x64xf32, #tpu.memory_space<vmem>>, vector<1x16x64xf32>
      %36 = vector.shape_cast %35 : vector<1x16x64xf32> to vector<16x64xf32>
      %37 = vector.broadcast %32 : vector<1x64xf32> to vector<16x64xf32>
      %38 = arith.mulf %36, %37 : vector<16x64xf32>
      %39 = vector.broadcast %33 : vector<1x64xf32> to vector<16x64xf32>
      %40 = arith.addf %38, %39 : vector<16x64xf32>
      %cst = arith.constant 0.000000e+00 : f32
      %41 = vector.broadcast %cst : f32 to vector<16x64xf32>
      %42 = arith.maximumf %40, %41 : vector<16x64xf32>
      %43 = arith.truncf %42 : vector<16x64xf32> to vector<16x64xbf16>
      %c0_20 = arith.constant 0 : index
      %c0_21 = arith.constant 0 : index
      %44 = vector.load %arg5[%c0_20, %c0_21] : memref<64x256xbf16, #tpu.memory_space<vmem>>, vector<64x256xbf16>
      %cst_22 = arith.constant dense<0.000000e+00> : vector<16x256xf32>
      %45 = tpu.matmul %43, %44, %cst_22 {dimension_numbers = #tpu.dot_dimension_numbers<[1], [0], [0], [1], [0, 0, 1, 1], [], []>} : vector<16x64xbf16>, vector<64x256xbf16>, vector<16x256xf32> -> vector<16x256xf32>
      %c0_23 = arith.constant 0 : index
      %c0_24 = arith.constant 0 : index
      %46 = vector.load %arg20[%c0_23, %c0_24] : memref<2x256xf32, #tpu.memory_space<vmem>>, vector<1x256xf32>
      %cst_25 = arith.constant dense<0.000000e+00> : vector<256xf32>
      %47 = vector.multi_reduction <add>, %45, %cst_25 [0] : vector<16x256xf32> to vector<256xf32>
      %48 = vector.shape_cast %47 : vector<256xf32> to vector<1x256xf32>
      %49 = arith.addf %46, %48 : vector<1x256xf32>
      %c0_26 = arith.constant 0 : index
      %c0_27 = arith.constant 0 : index
      %50 = vector.load %arg20[%c0_26, %c0_27] : memref<2x256xf32, #tpu.memory_space<vmem>>, vector<1x256xf32>
      tpu.vector_store %arg20[%c0_26, %c0_27], %49 {strides = array<i32>} : memref<2x256xf32, #tpu.memory_space<vmem>>, vector<1x256xf32>,
      %c1_28 = arith.constant 1 : index
      %c0_29 = arith.constant 0 : index
      %51 = vector.load %arg20[%c1_28, %c0_29] : memref<2x256xf32, #tpu.memory_space<vmem>>, vector<1x256xf32>
      %52 = arith.mulf %45, %45 : vector<16x256xf32>
      %cst_30 = arith.constant dense<0.000000e+00> : vector<256xf32>
      %53 = vector.multi_reduction <add>, %52, %cst_30 [0] : vector<16x256xf32> to vector<256xf32>
      %54 = vector.shape_cast %53 : vector<256xf32> to vector<1x256xf32>
      %55 = arith.addf %51, %54 : vector<1x256xf32>
      %c1_31 = arith.constant 1 : index
      %c0_32 = arith.constant 0 : index
      %56 = vector.load %arg20[%c1_31, %c0_32] : memref<2x256xf32, #tpu.memory_space<vmem>>, vector<1x256xf32>
      tpu.vector_store %arg20[%c1_31, %c0_32], %55 {strides = array<i32>} : memref<2x256xf32, #tpu.memory_space<vmem>>, vector<1x256xf32>,
      %57 = arith.index_cast %arg1 : i32 to index
      %c0_33 = arith.constant 0 : index
      %c0_34 = arith.constant 0 : index
      %58 = vector.load %arg17[%57, %c0_33, %c0_34] : memref<2x16x256xf32, #tpu.memory_space<vmem>>, vector<1x16x256xf32>
      %59 = vector.shape_cast %58 : vector<1x16x256xf32> to vector<16x256xf32>
      %60 = vector.shape_cast %45 : vector<16x256xf32> to vector<1x16x256xf32>
      tpu.vector_store %arg17[%57, %c0_33, %c0_34], %60 {strides = array<i32>} : memref<2x16x256xf32, #tpu.memory_space<vmem>>, vector<1x16x256xf32>,
    } else {
    }
    %c3_i32 = arith.constant 3 : i32
    %24 = arith.cmpi eq, %arg0, %c3_i32 : i32
    %c0_i32_12 = arith.constant 0 : i32
    %25 = arith.cmpi eq, %arg1, %c0_i32_12 : i32
    %26 = arith.andi %24, %25 : i1
    %27 = arith.extui %26 : i1 to i32
    %c0_i32_13 = arith.constant 0 : i32
    %28 = arith.cmpi ne, %27, %c0_i32_13 : i32
    scf.if %28 {
      %c0 = arith.constant 0 : index
      %c0_16 = arith.constant 0 : index
      %32 = vector.load %arg20[%c0, %c0_16] : memref<2x256xf32, #tpu.memory_space<vmem>>, vector<1x256xf32>
      %c1 = arith.constant 1 : index
      %c0_17 = arith.constant 0 : index
      %33 = vector.load %arg20[%c1, %c0_17] : memref<2x256xf32, #tpu.memory_space<vmem>>, vector<1x256xf32>
      %c0_18 = arith.constant 0 : index
      %c0_19 = arith.constant 0 : index
      %34 = vector.load %arg7[%c0_18, %c0_19] : memref<256x256xf32, #tpu.memory_space<vmem>>, vector<256x256xf32>
      %cst = arith.constant dense<0.000000e+00> : vector<1x256xf32>
      %35 = tpu.matmul %32, %34, %cst {dimension_numbers = #tpu.dot_dimension_numbers<[1], [0], [0], [1], [0, 0, 1, 1], [], []>} : vector<1x256xf32>, vector<256x256xf32>, vector<1x256xf32> -> vector<1x256xf32>
      %cst_20 = arith.constant 5.120000e+02 : f32
      %36 = vector.broadcast %cst_20 : f32 to vector<1x256xf32>
      %37 = arith.divf %35, %36 : vector<1x256xf32>
      %c0_21 = arith.constant 0 : index
      %c0_22 = arith.constant 0 : index
      %38 = vector.load %arg7[%c0_21, %c0_22] : memref<256x256xf32, #tpu.memory_space<vmem>>, vector<256x256xf32>
      %cst_23 = arith.constant dense<0.000000e+00> : vector<1x256xf32>
      %39 = tpu.matmul %33, %38, %cst_23 {dimension_numbers = #tpu.dot_dimension_numbers<[1], [0], [0], [1], [0, 0, 1, 1], [], []>} : vector<1x256xf32>, vector<256x256xf32>, vector<1x256xf32> -> vector<1x256xf32>
      %cst_24 = arith.constant 5.120000e+02 : f32
      %40 = vector.broadcast %cst_24 : f32 to vector<1x256xf32>
      %41 = arith.divf %39, %40 : vector<1x256xf32>
      %42 = arith.mulf %37, %37 : vector<1x256xf32>
      %43 = arith.subf %41, %42 : vector<1x256xf32>
      %cst_25 = arith.constant 0.000000e+00 : f32
      %44 = vector.broadcast %cst_25 : f32 to vector<1x256xf32>
      %45 = arith.maximumf %43, %44 : vector<1x256xf32>
      %cst_26 = arith.constant 9.99999974E-6 : f32
      %46 = vector.broadcast %cst_26 : f32 to vector<1x256xf32>
      %47 = arith.addf %45, %46 : vector<1x256xf32>
      %48 = math.rsqrt %47 : vector<1x256xf32>
      %c0_27 = arith.constant 0 : index
      %c0_28 = arith.constant 0 : index
      %49 = vector.load %arg12[%c0_27, %c0_28] : memref<1x256xf32, #tpu.memory_space<vmem>>, vector<1x256xf32>
      %50 = arith.mulf %48, %49 : vector<1x256xf32>
      %c0_29 = arith.constant 0 : index
      %c0_30 = arith.constant 0 : index
      %51 = vector.load %arg13[%c0_29, %c0_30] : memref<1x256xf32, #tpu.memory_space<vmem>>, vector<1x256xf32>
      %52 = arith.mulf %37, %50 : vector<1x256xf32>
      %53 = arith.subf %51, %52 : vector<1x256xf32>
      %c0_31 = arith.constant 0 : index
      %c0_32 = arith.constant 0 : index
      %54 = vector.load %arg20[%c0_31, %c0_32] : memref<2x256xf32, #tpu.memory_space<vmem>>, vector<1x256xf32>
      tpu.vector_store %arg20[%c0_31, %c0_32], %50 {strides = array<i32>} : memref<2x256xf32, #tpu.memory_space<vmem>>, vector<1x256xf32>,
      %c1_33 = arith.constant 1 : index
      %c0_34 = arith.constant 0 : index
      %55 = vector.load %arg20[%c1_33, %c0_34] : memref<2x256xf32, #tpu.memory_space<vmem>>, vector<1x256xf32>
      tpu.vector_store %arg20[%c1_33, %c0_34], %53 {strides = array<i32>} : memref<2x256xf32, #tpu.memory_space<vmem>>, vector<1x256xf32>,
    } else {
    }
    %c3_i32_14 = arith.constant 3 : i32
    %29 = arith.cmpi eq, %arg0, %c3_i32_14 : i32
    %30 = arith.extui %29 : i1 to i32
    %c0_i32_15 = arith.constant 0 : i32
    %31 = arith.cmpi ne, %30, %c0_i32_15 : i32
    scf.if %31 {
      %c0 = arith.constant 0 : index
      %c0_16 = arith.constant 0 : index
      %32 = vector.load %arg20[%c0, %c0_16] : memref<2x256xf32, #tpu.memory_space<vmem>>, vector<1x256xf32>
      %c1 = arith.constant 1 : index
      %c0_17 = arith.constant 0 : index
      %33 = vector.load %arg20[%c1, %c0_17] : memref<2x256xf32, #tpu.memory_space<vmem>>, vector<1x256xf32>
      %34 = arith.index_cast %arg1 : i32 to index
      %c0_18 = arith.constant 0 : index
      %c0_19 = arith.constant 0 : index
      %35 = vector.load %arg17[%34, %c0_18, %c0_19] : memref<2x16x256xf32, #tpu.memory_space<vmem>>, vector<1x16x256xf32>
      %36 = vector.shape_cast %35 : vector<1x16x256xf32> to vector<16x256xf32>
      %37 = vector.broadcast %32 : vector<1x256xf32> to vector<16x256xf32>
      %38 = arith.mulf %36, %37 : vector<16x256xf32>
      %39 = vector.broadcast %33 : vector<1x256xf32> to vector<16x256xf32>
      %40 = arith.addf %38, %39 : vector<16x256xf32>
      %c0_20 = arith.constant 0 : index
      %c0_21 = arith.constant 0 : index
      %41 = vector.load %arg2[%c0_20, %c0_21] : memref<16x256xbf16, #tpu.memory_space<vmem>>, vector<16x256xbf16>
      %42 = arith.extf %41 : vector<16x256xbf16> to vector<16x256xf32>
      %43 = arith.addf %40, %42 : vector<16x256xf32>
      %cst = arith.constant 0.000000e+00 : f32
      %44 = vector.broadcast %cst : f32 to vector<16x256xf32>
      %45 = arith.maximumf %43, %44 : vector<16x256xf32>
      %c0_22 = arith.constant 0 : index
      %c0_23 = arith.constant 0 : index
      %46 = vector.load %arg14[%c0_22, %c0_23] : memref<16x256xf32, #tpu.memory_space<vmem>>, vector<16x256xf32>
      tpu.vector_store %arg14[%c0_22, %c0_23], %45 {strides = array<i32>} : memref<16x256xf32, #tpu.memory_space<vmem>>, vector<16x256xf32>,
    } else {
    }
    return
  }
  func.func @transform_0(%arg0: i32, %arg1: i32) -> (i32, i32) {
    %c0_i32 = arith.constant 0 : i32
    %0 = arith.cmpi eq, %arg0, %c0_i32 : i32
    %c3_i32 = arith.constant 3 : i32
    %1 = arith.cmpi eq, %arg0, %c3_i32 : i32
    %c0_i32_0 = arith.constant 0 : i32
    %2 = arith.select %1, %arg1, %c0_i32_0 : i32
    %3 = arith.select %0, %arg1, %2 : i32
    %c0_i32_1 = arith.constant 0 : i32
    %c0_i32_2 = arith.constant 0 : i32
    return %3, %c0_i32_1 : i32, i32
  }
  func.func @transform_1(%arg0: i32, %arg1: i32) -> (i32, i32) {
    %c0_i32 = arith.constant 0 : i32
    %c0_i32_0 = arith.constant 0 : i32
    %c0_i32_1 = arith.constant 0 : i32
    return %c0_i32, %c0_i32_0 : i32, i32
  }
  func.func @transform_2(%arg0: i32, %arg1: i32) -> (i32, i32, i32) {
    %c0_i32 = arith.constant 0 : i32
    %c0_i32_0 = arith.constant 0 : i32
    %c0_i32_1 = arith.constant 0 : i32
    %c0_i32_2 = arith.constant 0 : i32
    return %c0_i32, %c0_i32_0, %c0_i32_1 : i32, i32, i32
  }
  func.func @transform_3(%arg0: i32, %arg1: i32) -> (i32, i32) {
    %c0_i32 = arith.constant 0 : i32
    %c0_i32_0 = arith.constant 0 : i32
    %c0_i32_1 = arith.constant 0 : i32
    return %c0_i32, %c0_i32_0 : i32, i32
  }
  func.func @transform_4(%arg0: i32, %arg1: i32) -> (i32, i32) {
    %c0_i32 = arith.constant 0 : i32
    %c0_i32_0 = arith.constant 0 : i32
    %c0_i32_1 = arith.constant 0 : i32
    return %c0_i32, %c0_i32_0 : i32, i32
  }
  func.func @transform_5(%arg0: i32, %arg1: i32) -> (i32, i32) {
    %c0_i32 = arith.constant 0 : i32
    %c0_i32_0 = arith.constant 0 : i32
    %c0_i32_1 = arith.constant 0 : i32
    return %c0_i32, %c0_i32_0 : i32, i32
  }
  func.func @transform_6(%arg0: i32, %arg1: i32) -> (i32, i32) {
    %c0_i32 = arith.constant 0 : i32
    %c0_i32_0 = arith.constant 0 : i32
    %c0_i32_1 = arith.constant 0 : i32
    return %c0_i32, %c0_i32_0 : i32, i32
  }
  func.func @transform_7(%arg0: i32, %arg1: i32) -> (i32, i32) {
    %c0_i32 = arith.constant 0 : i32
    %c0_i32_0 = arith.constant 0 : i32
    %c0_i32_1 = arith.constant 0 : i32
    return %c0_i32, %c0_i32_0 : i32, i32
  }
  func.func @transform_8(%arg0: i32, %arg1: i32) -> (i32, i32) {
    %c0_i32 = arith.constant 0 : i32
    %c0_i32_0 = arith.constant 0 : i32
    %c0_i32_1 = arith.constant 0 : i32
    return %c0_i32, %c0_i32_0 : i32, i32
  }
  func.func @transform_9(%arg0: i32, %arg1: i32) -> (i32, i32) {
    %c0_i32 = arith.constant 0 : i32
    %c0_i32_0 = arith.constant 0 : i32
    %c0_i32_1 = arith.constant 0 : i32
    return %c0_i32, %c0_i32_0 : i32, i32
  }
  func.func @transform_10(%arg0: i32, %arg1: i32) -> (i32, i32) {
    %c0_i32 = arith.constant 0 : i32
    %c0_i32_0 = arith.constant 0 : i32
    %c0_i32_1 = arith.constant 0 : i32
    return %c0_i32, %c0_i32_0 : i32, i32
  }
  func.func @transform_11(%arg0: i32, %arg1: i32) -> (i32, i32) {
    %c0_i32 = arith.constant 0 : i32
    %c0_i32_0 = arith.constant 0 : i32
    %c0_i32_1 = arith.constant 0 : i32
    return %c0_i32, %c0_i32_0 : i32, i32
  }
  func.func @transform_12(%arg0: i32, %arg1: i32) -> (i32, i32) {
    %c3_i32 = arith.constant 3 : i32
    %0 = arith.cmpi eq, %arg0, %c3_i32 : i32
    %c0_i32 = arith.constant 0 : i32
    %1 = arith.select %0, %arg1, %c0_i32 : i32
    %c0_i32_0 = arith.constant 0 : i32
    %c0_i32_1 = arith.constant 0 : i32
    return %1, %c0_i32_0 : i32, i32
  }
}

</mosaic_0001>

<llo_original>
// kernel: tpu_custom_call.1
$region0: #{tpu_custom_call.1}
  #allocation0 [shape = 'u32[]', space=smem, size = 0x4, offset = 0x4, fixed_abs, tag = 'smem constant byte address 0x4 - core index']
  #allocation1 [shape = 'u32[72,128]{1,0:T(1,128)}', space=vmem, size = 0x9000, scoped, tag = 'internal scratch']
  #allocation2 [shape = 'f32[2,18,64]{2,1,0:T(8,128)}', space=vmem, size = 0x6000, scoped, tag = 'scratch operand']
  #allocation3 [shape = 'f32[2,16,64]{2,1,0:T(8,128)}', space=vmem, size = 0x4000, scoped, tag = 'scratch operand']
  #allocation4 [shape = 'f32[2,16,256]{2,1,0:T(8,128)}', space=vmem, size = 0x8000, scoped, tag = 'scratch operand']
  #allocation5 [shape = 'f32[2,64]{1,0:T(2,128)}', space=vmem, size = 0x400, scoped, tag = 'scratch operand']
  #allocation6 [shape = 'f32[2,64]{1,0:T(2,128)}', space=vmem, size = 0x400, scoped, tag = 'scratch operand']
  #allocation7 [shape = 'f32[2,256]{1,0:T(2,128)}', space=vmem, size = 0x800, scoped, tag = 'scratch operand']
  %s0 = inlined_call_operand.vmem [shape: bf16[32,256], index: 0, kind: input, shape index: {}]
  %s1 = inlined_call_operand.vmem [shape: bf16[256,64], index: 1, kind: input, shape index: {}]
  %s2 = inlined_call_operand.vmem [shape: bf16[3,64,64], index: 2, kind: input, shape index: {}]
  %s3 = inlined_call_operand.vmem [shape: bf16[64,256], index: 3, kind: input, shape index: {}]
  %s4 = inlined_call_operand.hbm [shape: f32[64,64], index: 4, kind: input, shape index: {}]
  %s5 = inlined_call_operand.hbm [shape: f32[256,256], index: 5, kind: input, shape index: {}]
  %s6 = inlined_call_operand.vmem [shape: f32[1,64], index: 6, kind: input, shape index: {}]
  %s7 = inlined_call_operand.hbm [shape: f32[1,64], index: 7, kind: input, shape index: {}]
  %s8 = inlined_call_operand.hbm [shape: f32[1,64], index: 8, kind: input, shape index: {}]
  %s9 = inlined_call_operand.vmem [shape: f32[1,64], index: 9, kind: input, shape index: {}]
  %s10 = inlined_call_operand.vmem [shape: f32[1,256], index: 10, kind: input, shape index: {}]
  %s11 = inlined_call_operand.vmem [shape: f32[1,256], index: 11, kind: input, shape index: {}]
  %s12 = inlined_call_operand.hbm [shape: f32[32,256], index: 12, kind: output, shape index: {}]
  %s13 = sld [smem:[#allocation0]]
  $region129: #{tpu_custom_call.1} parent=0
    _
  %s15 = ssub.s32 1, %s13
  %s16 = scalar_select 0, %s15, %s13
  $region1: #{tpu_custom_call.1} parent=0
    #allocation8 [shape = 'u8[32768]{0}', space=vmem, size = 0x8000, scoped, tag = 'input window, operand 4, single buffered']
    #allocation9 [shape = 's32[2]{0}', space=sflag, size = 0x8, scoped, tag = 'scoped memory for tpu_custom_call.1']
    #allocation10 [shape = 's32[2]{0}', space=sflag, size = 0x8, scoped, tag = 'scoped memory for tpu_custom_call.1']
    #allocation11 [shape = 'u8[262144]{0}', space=vmem, size = 0x40000, scoped, tag = 'input window, operand 5, single buffered']
    #allocation12 [shape = 's32[1]{0}', space=sflag, size = 0x4, scoped, tag = 'scoped memory for tpu_custom_call.1']
    #allocation13 [shape = 'u8[512]{0}', space=vmem, size = 0x400, scoped, tag = 'input window, operand 7, single buffered']
    #allocation14 [shape = 'u8[512]{0}', space=vmem, size = 0x400, scoped, tag = 'input window, operand 8, single buffered']
    #allocation15 [shape = 's32[1]{0}', space=sflag, size = 0x4, scoped, tag = 'scoped memory for tpu_custom_call.1']
    #allocation16 [shape = 'u8[32768]{0}', space=vmem, size = 0x8000, scoped, tag = 'output window, operand 0']
    %17 = vsyncpa [#allocation9], 0
    %18 = vsyncpa [#allocation12], 0
    %19 = vsyncpa [#allocation15], 0
    %20 = vsyncpa [#allocation10], 0
    %s21 = scalar_lea.sflag [#allocation10], 1
    %22 = vsyncpa %s21, 0
    loop: start=0, step=1, limit=10
    $region2: #{tpu_custom_call.1} parent=1 // loop_pre_header
      _
    $region3: #{tpu_custom_call.1} parent=1 // loop_header
      %s24 = sphi 0, %s28
      %p25 = scmp.ge.s32.totalorder %s24, 10
      %s31 = sphi 0, %s43
      %s32 = sphi 0, %s39
      %s33 = sphi 0, %s31
      %s34 = sphi 0, %s32
      %s35 = sphi 0, %s33
      %s36 = sphi 0, %s34
      %s54 = sphi 0, %s56
      %s57 = sphi 0, %s54
      %s58 = sphi 0, %s57
      %s74 = sphi 0, %s58
      %s78 = sphi 0, %s78
      %s80 = sphi 0, %s78
      %s81 = sphi 0, %s80
      %s95 = sphi 0, %s81
      %s99 = sphi 0, %s99
      %s101 = sphi 0, %s99
      %s102 = sphi 0, %s101
      %s116 = sphi 0, %s102
      %s120 = sphi 0, %s120
      %s122 = sphi 0, %s120
      %s123 = sphi 0, %s122
      %s137 = sphi 0, %s123
      %s141 = sphi 0, %s141
      %s143 = sphi 0, %s141
      %s144 = sphi 0, %s143
      %s158 = sphi 0, %s144
      %s162 = sphi 0, %s162
      %s164 = sphi 0, %s162
      %s165 = sphi 0, %s164
      %s179 = sphi 0, %s165
      %s183 = sphi 0, %s183
      %s185 = sphi 0, %s183
      %s186 = sphi 0, %s185
      %s200 = sphi 0, %s186
      %s204 = sphi 0, %s204
      %s206 = sphi 0, %s204
      %s207 = sphi 0, %s206
      %s221 = sphi 0, %s207
      %s225 = sphi 0, %s225
      %s227 = sphi 0, %s225
      %s228 = sphi 0, %s227
      %s242 = sphi 0, %s228
      %s246 = sphi 0, %s246
      %s248 = sphi 0, %s246
      %s249 = sphi 0, %s248
      %s263 = sphi 0, %s249
      %s267 = sphi 0, %s267
      %s269 = sphi 0, %s267
      %s270 = sphi 0, %s269
      %s284 = sphi 0, %s270
      %s288 = sphi 0, %s288
      %s290 = sphi 0, %s288
      %s291 = sphi 0, %s290
      %s305 = sphi 0, %s291
      %s315 = sphi 0, %s317
      %s318 = sphi 0, %s315
      %s319 = sphi 0, %s318
      %s335 = sphi 0, %s319
    $region4: #{tpu_custom_call.1} parent=1 // loop_header_branch
      %27 = sbr.rel (%p25) target = $region8
    $region5: #{tpu_custom_call.1} parent=1 // loop_body
      %s29 = ssub.s32 %s24, 1
      %s30 = ssub.s32 %s24, 2
      %s37 = sadd.s32 1, %s32
      %p38 = scmp.ge.s32.totalorder %s37, 2
      %s39 = scalar_select %p38, 0, %s37
      %s40 = sadd.s32 1, %s31
      %s41 = scalar_select %p38, %s40, %s31
      %p42 = scmp.ge.s32.totalorder %s41, 4
      %s43 = scalar_select %p42, 0, %s41
      %p44 = scmp.eq.s32.totalorder %s31, 0
      %p45 = scmp.eq.s32.totalorder %s31, 3
      %s46 = scalar_select %p45, %s32, 0
      %s47 = scalar_select %p44, %s32, %s46
      %p48 = scmp.eq.s32.totalorder %s43, 0
      %p49 = scmp.eq.s32.totalorder %s43, 3
      %s50 = scalar_select %p49, %s39, 0
      %s51 = scalar_select %p48, %s39, %s50
      %s52 = ssub.s32 %s47, %s51
      %p53 = scmp.eq.s32.totalorder %s52, 0
      %s55 = sadd.s32 %s54, 1
      %s56 = scalar_select %p53, %s54, %s55
      %p59 = pneg %p53
      %p60 = scmp.eq.s32.totalorder %s24, 7
      %p61 = por %p59, %p60
      %p62 = scmp.ne.s32.totalorder %s54, %s57
      %p63 = scmp.eq.s32.totalorder %s24, 0
      %p64 = por %p62, %p63
      %p65 = scmp.ne.s32.totalorder %s54, %s57
      %p66 = scmp.eq.s32.totalorder %s29, 7
      %p67 = por %p65, %p66
      %p68 = scmp.ne.s32.totalorder %s57, %s58
      %p69 = scmp.eq.s32.totalorder %s29, 0
      %p70 = por %p68, %p69
      %p71 = scmp.ne.s32.totalorder %s57, %s58
      %p72 = scmp.eq.s32.totalorder %s30, 7
      %p73 = por %p71, %p72
      %p75 = scmp.ne.s32.totalorder %s58, %s74
      %p76 = scmp.eq.s32.totalorder %s30, 0
      %p77 = por %p75, %p76
      %s79 = sadd.s32 %s78, 1
      %p82 = scmp.eq.s32.totalorder %s24, 7
      %p83 = scmp.ne.s32.totalorder %s78, %s80
      %p84 = scmp.eq.s32.totalorder %s24, 0
      %p85 = por %p83, %p84
      %p86 = scmp.ne.s32.totalorder %s78, %s80
      %p87 = scmp.eq.s32.totalorder %s29, 7
      %p88 = por %p86, %p87
      %p89 = scmp.ne.s32.totalorder %s80, %s81
      %p90 = scmp.eq.s32.totalorder %s29, 0
      %p91 = por %p89, %p90
      %p92 = scmp.ne.s32.totalorder %s80, %s81
      %p93 = scmp.eq.s32.totalorder %s30, 7
      %p94 = por %p92, %p93
      %p96 = scmp.ne.s32.totalorder %s81, %s95
      %p97 = scmp.eq.s32.totalorder %s30, 0
      %p98 = por %p96, %p97
      %s100 = sadd.s32 %s99, 1
      %p103 = scmp.eq.s32.totalorder %s24, 7
      %p104 = scmp.ne.s32.totalorder %s99, %s101
      %p105 = scmp.eq.s32.totalorder %s24, 0
      %p106 = por %p104, %p105
      %p107 = scmp.ne.s32.totalorder %s99, %s101
      %p108 = scmp.eq.s32.totalorder %s29, 7
      %p109 = por %p107, %p108
      %p110 = scmp.ne.s32.totalorder %s101, %s102
      %p111 = scmp.eq.s32.totalorder %s29, 0
      %p112 = por %p110, %p111
      %p113 = scmp.ne.s32.totalorder %s101, %s102
      %p114 = scmp.eq.s32.totalorder %s30, 7
      %p115 = por %p113, %p114
      %p117 = scmp.ne.s32.totalorder %s102, %s116
      %p118 = scmp.eq.s32.totalorder %s30, 0
      %p119 = por %p117, %p118
      %s121 = sadd.s32 %s120, 1
      %p124 = scmp.eq.s32.totalorder %s24, 7
      %p125 = scmp.ne.s32.totalorder %s120, %s122
      %p126 = scmp.eq.s32.totalorder %s24, 0
      %p127 = por %p125, %p126
      %p128 = scmp.ne.s32.totalorder %s120, %s122
      %p129 = scmp.eq.s32.totalorder %s29, 7
      %p130 = por %p128, %p129
      %p131 = scmp.ne.s32.totalorder %s122, %s123
      %p132 = scmp.eq.s32.totalorder %s29, 0
      %p133 = por %p131, %p132
      %p134 = scmp.ne.s32.totalorder %s122, %s123
      %p135 = scmp.eq.s32.totalorder %s30, 7
      %p136 = por %p134, %p135
      %p138 = scmp.ne.s32.totalorder %s123, %s137
      %p139 = scmp.eq.s32.totalorder %s30, 0
      %p140 = por %p138, %p139
      %s142 = sadd.s32 %s141, 1
      %p145 = scmp.eq.s32.totalorder %s24, 7
      %p146 = scmp.ne.s32.totalorder %s141, %s143
      %p147 = scmp.eq.s32.totalorder %s24, 0
      %p148 = por %p146, %p147
      %p149 = scmp.ne.s32.totalorder %s141, %s143
      %p150 = scmp.eq.s32.totalorder %s29, 7
      %p151 = por %p149, %p150
      %p152 = scmp.ne.s32.totalorder %s143, %s144
      %p153 = scmp.eq.s32.totalorder %s29, 0
      %p154 = por %p152, %p153
      %p155 = scmp.ne.s32.totalorder %s143, %s144
      %p156 = scmp.eq.s32.totalorder %s30, 7
      %p157 = por %p155, %p156
      %p159 = scmp.ne.s32.totalorder %s144, %s158
      %p160 = scmp.eq.s32.totalorder %s30, 0
      %p161 = por %p159, %p160
      %s163 = sadd.s32 %s162, 1
      %p166 = scmp.eq.s32.totalorder %s24, 7
      %p167 = scmp.ne.s32.totalorder %s162, %s164
      %p168 = scmp.eq.s32.totalorder %s24, 0
      %p169 = por %p167, %p168
      %p170 = scmp.ne.s32.totalorder %s162, %s164
      %p171 = scmp.eq.s32.totalorder %s29, 7
      %p172 = por %p170, %p171
      %p173 = scmp.ne.s32.totalorder %s164, %s165
      %p174 = scmp.eq.s32.totalorder %s29, 0
      %p175 = por %p173, %p174
      %p176 = scmp.ne.s32.totalorder %s164, %s165
      %p177 = scmp.eq.s32.totalorder %s30, 7
      %p178 = por %p176, %p177
      %p180 = scmp.ne.s32.totalorder %s165, %s179
      %p181 = scmp.eq.s32.totalorder %s30, 0
      %p182 = por %p180, %p181
      %s184 = sadd.s32 %s183, 1
      %p187 = scmp.eq.s32.totalorder %s24, 7
      %p188 = scmp.ne.s32.totalorder %s183, %s185
      %p189 = scmp.eq.s32.totalorder %s24, 0
      %p190 = por %p188, %p189
      %p191 = scmp.ne.s32.totalorder %s183, %s185
      %p192 = scmp.eq.s32.totalorder %s29, 7
      %p193 = por %p191, %p192
      %p194 = scmp.ne.s32.totalorder %s185, %s186
      %p195 = scmp.eq.s32.totalorder %s29, 0
      %p196 = por %p194, %p195
      %p197 = scmp.ne.s32.totalorder %s185, %s186
      %p198 = scmp.eq.s32.totalorder %s30, 7
      %p199 = por %p197, %p198
      %p201 = scmp.ne.s32.totalorder %s186, %s200
      %p202 = scmp.eq.s32.totalorder %s30, 0
      %p203 = por %p201, %p202
      %s205 = sadd.s32 %s204, 1
      %p208 = scmp.eq.s32.totalorder %s24, 7
      %p209 = scmp.ne.s32.totalorder %s204, %s206
      %p210 = scmp.eq.s32.totalorder %s24, 0
      %p211 = por %p209, %p210
      %p212 = scmp.ne.s32.totalorder %s204, %s206
      %p213 = scmp.eq.s32.totalorder %s29, 7
      %p214 = por %p212, %p213
      %p215 = scmp.ne.s32.totalorder %s206, %s207
      %p216 = scmp.eq.s32.totalorder %s29, 0
      %p217 = por %p215, %p216
      %p218 = scmp.ne.s32.totalorder %s206, %s207
      %p219 = scmp.eq.s32.totalorder %s30, 7
      %p220 = por %p218, %p219
      %p222 = scmp.ne.s32.totalorder %s207, %s221
      %p223 = scmp.eq.s32.totalorder %s30, 0
      %p224 = por %p222, %p223
      %s226 = sadd.s32 %s225, 1
      %p229 = scmp.eq.s32.totalorder %s24, 7
      %p230 = scmp.ne.s32.totalorder %s225, %s227
      %p231 = scmp.eq.s32.totalorder %s24, 0
      %p232 = por %p230, %p231
      %p233 = scmp.ne.s32.totalorder %s225, %s227
      %p234 = scmp.eq.s32.totalorder %s29, 7
      %p235 = por %p233, %p234
      %p236 = scmp.ne.s32.totalorder %s227, %s228
      %p237 = scmp.eq.s32.totalorder %s29, 0
      %p238 = por %p236, %p237
      %p239 = scmp.ne.s32.totalorder %s227, %s228
      %p240 = scmp.eq.s32.totalorder %s30, 7
      %p241 = por %p239, %p240
      %p243 = scmp.ne.s32.totalorder %s228, %s242
      %p244 = scmp.eq.s32.totalorder %s30, 0
      %p245 = por %p243, %p244
      %s247 = sadd.s32 %s246, 1
      %p250 = scmp.eq.s32.totalorder %s24, 7
      %p251 = scmp.ne.s32.totalorder %s246, %s248
      %p252 = scmp.eq.s32.totalorder %s24, 0
      %p253 = por %p251, %p252
      %p254 = scmp.ne.s32.totalorder %s246, %s248
      %p255 = scmp.eq.s32.totalorder %s29, 7
      %p256 = por %p254, %p255
      %p257 = scmp.ne.s32.totalorder %s248, %s249
      %p258 = scmp.eq.s32.totalorder %s29, 0
      %p259 = por %p257, %p258
      %p260 = scmp.ne.s32.totalorder %s248, %s249
      %p261 = scmp.eq.s32.totalorder %s30, 7
      %p262 = por %p260, %p261
      %p264 = scmp.ne.s32.totalorder %s249, %s263
      %p265 = scmp.eq.s32.totalorder %s30, 0
      %p266 = por %p264, %p265
      %s268 = sadd.s32 %s267, 1
      %p271 = scmp.eq.s32.totalorder %s24, 7
      %p272 = scmp.ne.s32.totalorder %s267, %s269
      %p273 = scmp.eq.s32.totalorder %s24, 0
      %p274 = por %p272, %p273
      %p275 = scmp.ne.s32.totalorder %s267, %s269
      %p276 = scmp.eq.s32.totalorder %s29, 7
      %p277 = por %p275, %p276
      %p278 = scmp.ne.s32.totalorder %s269, %s270
      %p279 = scmp.eq.s32.totalorder %s29, 0
      %p280 = por %p278, %p279
      %p281 = scmp.ne.s32.totalorder %s269, %s270
      %p282 = scmp.eq.s32.totalorder %s30, 7
      %p283 = por %p281, %p282
      %p285 = scmp.ne.s32.totalorder %s270, %s284
      %p286 = scmp.eq.s32.totalorder %s30, 0
      %p287 = por %p285, %p286
      %s289 = sadd.s32 %s288, 1
      %p292 = scmp.eq.s32.totalorder %s24, 7
      %p293 = scmp.ne.s32.totalorder %s288, %s290
      %p294 = scmp.eq.s32.totalorder %s24, 0
      %p295 = por %p293, %p294
      %p296 = scmp.ne.s32.totalorder %s288, %s290
      %p297 = scmp.eq.s32.totalorder %s29, 7
      %p298 = por %p296, %p297
      %p299 = scmp.ne.s32.totalorder %s290, %s291
      %p300 = scmp.eq.s32.totalorder %s29, 0
      %p301 = por %p299, %p300
      %p302 = scmp.ne.s32.totalorder %s290, %s291
      %p303 = scmp.eq.s32.totalorder %s30, 7
      %p304 = por %p302, %p303
      %p306 = scmp.ne.s32.totalorder %s291, %s305
      %p307 = scmp.eq.s32.totalorder %s30, 0
      %p308 = por %p306, %p307
      %p309 = scmp.eq.s32.totalorder %s31, 3
      %s310 = scalar_select %p309, %s32, 0
      %p311 = scmp.eq.s32.totalorder %s43, 3
      %s312 = scalar_select %p311, %s39, 0
      %s313 = ssub.s32 %s310, %s312
      %p314 = scmp.eq.s32.totalorder %s313, 0
      %s316 = sadd.s32 %s315, 1
      %s317 = scalar_select %p314, %s315, %s316
      %p320 = pneg %p314
      %p321 = scmp.eq.s32.totalorder %s24, 7
      %p322 = por %p320, %p321
      %p323 = scmp.ne.s32.totalorder %s315, %s318
      %p324 = scmp.eq.s32.totalorder %s24, 0
      %p325 = por %p323, %p324
      %p326 = scmp.ne.s32.totalorder %s315, %s318
      %p327 = scmp.eq.s32.totalorder %s29, 7
      %p328 = por %p326, %p327
      %p329 = scmp.ne.s32.totalorder %s318, %s319
      %p330 = scmp.eq.s32.totalorder %s29, 0
      %p331 = por %p329, %p330
      %p332 = scmp.ne.s32.totalorder %s318, %s319
      %p333 = scmp.eq.s32.totalorder %s30, 7
      %p334 = por %p332, %p333
      %p336 = scmp.ne.s32.totalorder %s319, %s335
      %p337 = scmp.eq.s32.totalorder %s30, 0
      %p338 = por %p336, %p337
      %p339 = scmp.le.s32.totalorder 1, %s24
      %p340 = scmp.lt.s32.totalorder %s24, 9
      %p341 = pnand %p339, %p340
      %p342 = pneg %p341
      // Predicated region
      $region9: #{tpu_custom_call.1} parent=5 // pred_check
        _
      $region10: #{tpu_custom_call.1} parent=5 // pred_check_branch
        %344 = sbr.rel (%p341) target = $region12
      $region11: #{tpu_custom_call.1} parent=5 // pred_region
        %s345 = ssub.s32 %s24, 1
        // Predicated region
        $region13: #{tpu_custom_call.1} parent=11 // pred_check
          %p346 = pneg %p91
        $region14: #{tpu_custom_call.1} parent=11 // pred_check_branch
          %348 = sbr.rel (%p346) target = $region16
        $region15: #{tpu_custom_call.1} parent=11 // pred_region
          _
        $region16: #{tpu_custom_call.1} parent=11 // pred_fallthru
          _
        // Predicated region
        $region17: #{tpu_custom_call.1} parent=11 // pred_check
          %p349 = pneg %p112
        $region18: #{tpu_custom_call.1} parent=11 // pred_check_branch
          %351 = sbr.rel (%p349) target = $region20
        $region19: #{tpu_custom_call.1} parent=11 // pred_region
          _
        $region20: #{tpu_custom_call.1} parent=11 // pred_fallthru
          _
        // Predicated region
        $region21: #{tpu_custom_call.1} parent=11 // pred_check
          %p352 = pneg %p133
        $region22: #{tpu_custom_call.1} parent=11 // pred_check_branch
          %354 = sbr.rel (%p352) target = $region24
        $region23: #{tpu_custom_call.1} parent=11 // pred_region
          _
        $region24: #{tpu_custom_call.1} parent=11 // pred_fallthru
          _
        // Predicated region
        $region25: #{tpu_custom_call.1} parent=11 // pred_check
          %p355 = pneg %p154
        $region26: #{tpu_custom_call.1} parent=11 // pred_check_branch
          %357 = sbr.rel (%p355) target = $region28
        $region27: #{tpu_custom_call.1} parent=11 // pred_region
          %359 = vsyncadd [#allocation9], 0
          %s360 = sshll.u32 %s4, 4
          %s361 = int_to_ptr.hbm [resolvable:$true] %s360
          %s362 = sshll.u32 [#allocation8], 4
          %s363 = int_to_ptr.vmem [resolvable:$true] %s362
          %368 = dma.hbm_to_vmem [thread:$0]  %s361, 1024, %s363, [#allocation9], 128, 128, 8
        $region28: #{tpu_custom_call.1} parent=11 // pred_fallthru
          _
        // Predicated region
        $region29: #{tpu_custom_call.1} parent=11 // pred_check
          %p369 = pneg %p175
        $region30: #{tpu_custom_call.1} parent=11 // pred_check_branch
          %371 = sbr.rel (%p369) target = $region32
        $region31: #{tpu_custom_call.1} parent=11 // pred_region
          %373 = vsyncadd [#allocation12], 0
          %s374 = sshll.u32 %s5, 4
          %s375 = int_to_ptr.hbm [resolvable:$true] %s374
          %s376 = sshll.u32 [#allocation11], 4
          %s377 = int_to_ptr.vmem [resolvable:$true] %s376
          %382 = dma.hbm_to_vmem [thread:$0]  %s375, 8192, %s377, [#allocation12], 256, 256, 16
        $region32: #{tpu_custom_call.1} parent=11 // pred_fallthru
          _
        // Predicated region
        $region33: #{tpu_custom_call.1} parent=11 // pred_check
          %p383 = pneg %p196
        $region34: #{tpu_custom_call.1} parent=11 // pred_check_branch
          %385 = sbr.rel (%p383) target = $region36
        $region35: #{tpu_custom_call.1} parent=11 // pred_region
          _
        $region36: #{tpu_custom_call.1} parent=11 // pred_fallthru
          _
        // Predicated region
        $region37: #{tpu_custom_call.1} parent=11 // pred_check
          %p386 = pneg %p217
        $region38: #{tpu_custom_call.1} parent=11 // pred_check_branch
          %388 = sbr.rel (%p386) target = $region40
        $region39: #{tpu_custom_call.1} parent=11 // pred_region
          %390 = vsyncadd [#allocation12], 0
          %s392 = sshll.u32 %s7, 4
          %s393 = int_to_ptr.hbm [resolvable:$true] %s392
          %s394 = sshll.u32 [#allocation13], 4
          %s395 = int_to_ptr.vmem [resolvable:$true] %s394
          %397 = dma.hbm_to_vmem [thread:$0]  %s393, 16, %s395, [#allocation12]
        $region40: #{tpu_custom_call.1} parent=11 // pred_fallthru
          _
        // Predicated region
        $region41: #{tpu_custom_call.1} parent=11 // pred_check
          %p398 = pneg %p238
        $region42: #{tpu_custom_call.1} parent=11 // pred_check_branch
          %400 = sbr.rel (%p398) target = $region44
        $region43: #{tpu_custom_call.1} parent=11 // pred_region
          %402 = vsyncadd [#allocation15], 0
          %s404 = sshll.u32 %s8, 4
          %s405 = int_to_ptr.hbm [resolvable:$true] %s404
          %s406 = sshll.u32 [#allocation14], 4
          %s407 = int_to_ptr.vmem [resolvable:$true] %s406
          %409 = dma.hbm_to_vmem [thread:$0]  %s405, 16, %s407, [#allocation15]
        $region44: #{tpu_custom_call.1} parent=11 // pred_fallthru
          _
        // Predicated region
        $region45: #{tpu_custom_call.1} parent=11 // pred_check
          %p410 = pneg %p259
        $region46: #{tpu_custom_call.1} parent=11 // pred_check_branch
          %412 = sbr.rel (%p410) target = $region48
        $region47: #{tpu_custom_call.1} parent=11 // pred_region
          _
        $region48: #{tpu_custom_call.1} parent=11 // pred_fallthru
          _
        // Predicated region
        $region49: #{tpu_custom_call.1} parent=11 // pred_check
          %p413 = pneg %p280
        $region50: #{tpu_custom_call.1} parent=11 // pred_check_branch
          %415 = sbr.rel (%p413) target = $region52
        $region51: #{tpu_custom_call.1} parent=11 // pred_region
          _
        $region52: #{tpu_custom_call.1} parent=11 // pred_fallthru
          _
        // Predicated region
        $region53: #{tpu_custom_call.1} parent=11 // pred_check
          %p416 = pneg %p301
        $region54: #{tpu_custom_call.1} parent=11 // pred_check_branch
          %418 = sbr.rel (%p416) target = $region56
        $region55: #{tpu_custom_call.1} parent=11 // pred_region
          _
        $region56: #{tpu_custom_call.1} parent=11 // pred_fallthru
          _
      $region12: #{tpu_custom_call.1} parent=5 // pred_fallthru
        _
      %p419 = scmp.lt.s32.totalorder %s24, 8
      // Predicated region
      $region57: #{tpu_custom_call.1} parent=5 // pred_check
        %p420 = pneg %p419
      $region58: #{tpu_custom_call.1} parent=5 // pred_check_branch
        %422 = sbr.rel (%p420) target = $region60
      $region59: #{tpu_custom_call.1} parent=5 // pred_region
        // Predicated region
        $region61: #{tpu_custom_call.1} parent=59 // pred_check
          %p423 = pneg %p64
        $region62: #{tpu_custom_call.1} parent=59 // pred_check_branch
          %425 = sbr.rel (%p423) target = $region64
        $region63: #{tpu_custom_call.1} parent=59 // pred_region
          %p426 = scmp.eq.s32.totalorder %s31, 0
          %p427 = scmp.eq.s32.totalorder %s31, 3
          %s428 = scalar_select %p427, %s32, 0
          %s429 = scalar_select %p426, %s32, %s428
          %s430 = smul.u32 2, %s429
          %p431 = scmp.lt.s32.totalorder %s430, 3
          %s432 = scalar_select %p431, %s430, 3
          %s433 = smul.addr %s432, 2
          %s434 = smul.addr %s433, 4
          %s435 = scalar_lea.vmem %s0, %s434
          %p436 = scmp.eq.s32.totalorder %s31, 0
          %p437 = scmp.eq.s32.totalorder %s31, 3
          %s438 = scalar_select %p437, %s32, 0
          %s439 = scalar_select %p436, %s32, %s438
          %s440 = smul.u32 2, %s439
        $region64: #{tpu_custom_call.1} parent=59 // pred_fallthru
          _
      $region60: #{tpu_custom_call.1} parent=5 // pred_fallthru
        _
      %p441 = scmp.le.s32.totalorder 1, %s24
      %p442 = scmp.lt.s32.totalorder %s24, 9
      %p443 = pnand %p441, %p442
      %p444 = pneg %p443
      // Predicated region
      $region65: #{tpu_custom_call.1} parent=5 // pred_check
        _
      $region66: #{tpu_custom_call.1} parent=5 // pred_check_branch
        %446 = sbr.rel (%p443) target = $region68
      $region67: #{tpu_custom_call.1} parent=5 // pred_region
        %s447 = ssub.s32 %s24, 1
        // Predicated region
        $region69: #{tpu_custom_call.1} parent=67 // pred_check
          %p448 = pneg %p154
        $region70: #{tpu_custom_call.1} parent=67 // pred_check_branch
          %450 = sbr.rel (%p448) target = $region72
        $region71: #{tpu_custom_call.1} parent=67 // pred_region
          %452 = dma.done [#allocation9], 1024
        $region72: #{tpu_custom_call.1} parent=67 // pred_fallthru
          _
        // Predicated region
        $region73: #{tpu_custom_call.1} parent=67 // pred_check
          %p453 = pneg %p175
        $region74: #{tpu_custom_call.1} parent=67 // pred_check_branch
          %455 = sbr.rel (%p453) target = $region76
        $region75: #{tpu_custom_call.1} parent=67 // pred_region
          %457 = dma.done [#allocation12], 8192
        $region76: #{tpu_custom_call.1} parent=67 // pred_fallthru
          _
        // Predicated region
        $region77: #{tpu_custom_call.1} parent=67 // pred_check
          %p458 = pneg %p217
        $region78: #{tpu_custom_call.1} parent=67 // pred_check_branch
          %460 = sbr.rel (%p458) target = $region80
        $region79: #{tpu_custom_call.1} parent=67 // pred_region
          %462 = dma.done [#allocation12], 16
        $region80: #{tpu_custom_call.1} parent=67 // pred_fallthru
          _
        // Predicated region
        $region81: #{tpu_custom_call.1} parent=67 // pred_check
          %p463 = pneg %p238
        $region82: #{tpu_custom_call.1} parent=67 // pred_check_branch
          %465 = sbr.rel (%p463) target = $region84
        $region83: #{tpu_custom_call.1} parent=67 // pred_region
          %467 = dma.done [#allocation15], 16
        $region84: #{tpu_custom_call.1} parent=67 // pred_fallthru
          _
        %p468 = scmp.eq.s32.totalorder %s33, 0
        %p469 = scmp.eq.s32.totalorder %s33, 3
        %s470 = scalar_select %p469, %s34, 0
        %s471 = scalar_select %p468, %s34, %s470
        %s472 = smul.u32 2, %s471
        %p473 = scmp.lt.s32.totalorder %s472, 3
        %s474 = scalar_select %p473, %s472, 3
        %s475 = smul.addr %s474, 2
        %s476 = smul.addr %s475, 4
        %s477 = scalar_lea.vmem %s0, %s476
        %p478 = pneg %p70
        %p479 = pneg %p67
        %p480 = pneg %p91
        %p481 = pneg %p88
        %p482 = pneg %p112
        %p483 = pneg %p109
        %p484 = pneg %p133
        %p485 = pneg %p130
        %p486 = pneg %p154
        %p487 = pneg %p151
        %p488 = pneg %p175
        %p489 = pneg %p172
        %p490 = pneg %p196
        %p491 = pneg %p193
        %p492 = pneg %p217
        %p493 = pneg %p214
        %p494 = pneg %p238
        %p495 = pneg %p235
        %p496 = pneg %p259
        %p497 = pneg %p256
        %p498 = pneg %p280
        %p499 = pneg %p277
        %p500 = pneg %p301
        %p501 = pneg %p298
        %p502 = pneg %p331
        %p503 = pneg %p328
        %s504 = sand.u32 %s318, 1
        %s505 = scalar_lea.sflag [#allocation10], %s504
        %s506 = sand.u32 %s318, 1
        %s507 = smul.addr %s506, 32
        %s508 = scalar_lea.vmem [#allocation16], %s507
        %p509 = scmp.eq.s32.totalorder %s33, 0
        %p510 = scmp.eq.s32.totalorder %s33, 3
        %s511 = scalar_select %p510, %s34, 0
        %s512 = scalar_select %p509, %s34, %s511
        %s513 = smul.u32 2, %s512
        %p514 = scmp.lt.s32.totalorder %s513, 3
        %s515 = scalar_select %p514, %s513, 3
        %s516 = smul.addr %s515, 2
        %s517 = smul.addr %s516, 4
        %s518 = scalar_lea.vmem %s0, %s517
        %p519 = scmp.eq.s32.totalorder %s33, 0
        %p520 = scmp.eq.s32.totalorder %s33, 3
        %s521 = scalar_select %p520, %s34, 0
        %s522 = scalar_select %p519, %s34, %s521
        %s523 = smul.u32 2, %s522
        %p524 = scmp.eq.s32.totalorder %s33, 3
        %s525 = scalar_select %p524, %s34, 0
        %s526 = smul.u32 2, %s525
        %p528 = scmp.eq.s32.totalorder %s33, 0
        %p529 = scmp.eq.s32.totalorder %s34, 0
        %p530 = pnand %p528, %p529
        %p531 = pneg %p530
        // Predicated region
        $region85: #{tpu_custom_call.1} parent=67 // pred_check
          _
        $region86: #{tpu_custom_call.1} parent=67 // pred_check_branch
          %533 = sbr.rel (%p530) target = $region88
        $region87: #{tpu_custom_call.1} parent=67 // pred_region
          %vm534 = vcmask 523264
          %535 = vst.msk [vmem:[#allocation2] sm:$0xff] %vm534, 0.0
          %536 = vst.msk [vmem:[#allocation2 + $0x8] sm:$0xff] %vm534, 0.0
          %vm537 = vcmask 517120
          %538 = vst.msk [vmem:[#allocation2 + $0x10] sm:$0x3] %vm537, 0.0
          %539 = vst.msk [vmem:[#allocation2 + $0x18] sm:$0xff] %vm534, 0.0
          %540 = vst.msk [vmem:[#allocation2 + $0x20] sm:$0xff] %vm534, 0.0
          %541 = vst.msk [vmem:[#allocation2 + $0x28] sm:$0x3] %vm537, 0.0
          %542 = vst.msk [vmem:[#allocation5] sm:$0x3] %vm537, 0.0
          %543 = vst.msk [vmem:[#allocation6] sm:$0x3] %vm537, 0.0
          %544 = vst [vmem:[#allocation7] sm:$0xf] 0.0
        $region88: #{tpu_custom_call.1} parent=67 // pred_fallthru
          _
        // Predicated region
        $region89: #{tpu_custom_call.1} parent=67 // pred_check
          %p545 = pneg %p528
        $region90: #{tpu_custom_call.1} parent=67 // pred_check_branch
          %547 = sbr.rel (%p545) target = $region92
        $region91: #{tpu_custom_call.1} parent=67 // pred_region
          %v548 = vld [vmem:[%s518] sm:$0xff]
          %v549 = vld [vmem:[%s518 + $0x8] sm:$0xff]
          %v550 = vld [vmem:[%s1] sm:$0xf]
          %v551 = vld [vmem:[%s1 + $0x4] sm:$0xf]
          %v552 = vld [vmem:[%s1 + $0x8] sm:$0xf]
          %v553 = vld [vmem:[%s1 + $0xc] sm:$0xf]
          %v554 = vld [vmem:[%s1 + $0x10] sm:$0xf]
          %v555 = vld [vmem:[%s1 + $0x14] sm:$0xf]
          %v556 = vld [vmem:[%s1 + $0x18] sm:$0xf]
          %v557 = vld [vmem:[%s1 + $0x1c] sm:$0xf]
          %v558 = vld [vmem:[%s1 + $0x20] sm:$0xf]
          %v559 = vld [vmem:[%s1 + $0x24] sm:$0xf]
          %v560 = vld [vmem:[%s1 + $0x28] sm:$0xf]
          %v561 = vld [vmem:[%s1 + $0x2c] sm:$0xf]
          %v562 = vld [vmem:[%s1 + $0x30] sm:$0xf]
          %v563 = vld [vmem:[%s1 + $0x34] sm:$0xf]
          %v564 = vld [vmem:[%s1 + $0x38] sm:$0xf]
          %v565 = vld [vmem:[%s1 + $0x3c] sm:$0xf]
          %v566 = vld [vmem:[%s1 + $0x40] sm:$0xf]
          %v567 = vld [vmem:[%s1 + $0x44] sm:$0xf]
          %v568 = vld [vmem:[%s1 + $0x48] sm:$0xf]
          %v569 = vld [vmem:[%s1 + $0x4c] sm:$0xf]
          %v570 = vld [vmem:[%s1 + $0x50] sm:$0xf]
          %v571 = vld [vmem:[%s1 + $0x54] sm:$0xf]
          %v572 = vld [vmem:[%s1 + $0x58] sm:$0xf]
          %v573 = vld [vmem:[%s1 + $0x5c] sm:$0xf]
          %v574 = vld [vmem:[%s1 + $0x60] sm:$0xf]
          %v575 = vld [vmem:[%s1 + $0x64] sm:$0xf]
          %v576 = vld [vmem:[%s1 + $0x68] sm:$0xf]
          %v577 = vld [vmem:[%s1 + $0x6c] sm:$0xf]
          %v578 = vld [vmem:[%s1 + $0x70] sm:$0xf]
          %v579 = vld [vmem:[%s1 + $0x74] sm:$0xf]
          %v580 = vld [vmem:[%s1 + $0x78] sm:$0xf]
          %v581 = vld [vmem:[%s1 + $0x7c] sm:$0xf]
          %v584 = vunpack.c.l.b16 %v548
          %v585 = vunpack.c.h.b16 %v548
          %v586 = vunpack.c.l.b16 %v549
          %v587 = vunpack.c.h.b16 %v549
          %v588 = vpack.c.b16 %v586, %v584
          %v589 = vpack.c.b16 %v587, %v585
          %v624 = vunpack.c.l.b16 %v550
          %v625 = vunpack.c.l.b16 %v551
          %v626 = vunpack.c.l.b16 %v552
          %v627 = vunpack.c.l.b16 %v553
          %v628 = vunpack.c.l.b16 %v554
          %v629 = vunpack.c.l.b16 %v555
          %v630 = vunpack.c.l.b16 %v556
          %v631 = vunpack.c.l.b16 %v557
          %v632 = vunpack.c.l.b16 %v558
          %v633 = vunpack.c.l.b16 %v559
          %v634 = vunpack.c.l.b16 %v560
          %v635 = vunpack.c.l.b16 %v561
          %v636 = vunpack.c.l.b16 %v562
          %v637 = vunpack.c.l.b16 %v563
          %v638 = vunpack.c.l.b16 %v564
          %v639 = vunpack.c.l.b16 %v565
          %v640 = vunpack.c.l.b16 %v566
          %v641 = vunpack.c.l.b16 %v567
          %v642 = vunpack.c.l.b16 %v568
          %v643 = vunpack.c.l.b16 %v569
          %v644 = vunpack.c.l.b16 %v570
          %v645 = vunpack.c.l.b16 %v571
          %v646 = vunpack.c.l.b16 %v572
          %v647 = vunpack.c.l.b16 %v573
          %v648 = vunpack.c.l.b16 %v574
          %v649 = vunpack.c.l.b16 %v575
          %v650 = vunpack.c.l.b16 %v576
          %v651 = vunpack.c.l.b16 %v577
          %v652 = vunpack.c.l.b16 %v578
          %v653 = vunpack.c.l.b16 %v579
          %v654 = vunpack.c.l.b16 %v580
          %v655 = vunpack.c.l.b16 %v581
          %v656 = vpack.c.b16 %v625, %v624
          %v657 = vpack.c.b16 %v627, %v626
          %v658 = vpack.c.b16 %v629, %v628
          %v659 = vpack.c.b16 %v631, %v630
          %v660 = vpack.c.b16 %v633, %v632
          %v661 = vpack.c.b16 %v635, %v634
          %v662 = vpack.c.b16 %v637, %v636
          %v663 = vpack.c.b16 %v639, %v638
          %v664 = vpack.c.b16 %v641, %v640
          %v665 = vpack.c.b16 %v643, %v642
          %v666 = vpack.c.b16 %v645, %v644
          %v667 = vpack.c.b16 %v647, %v646
          %v668 = vpack.c.b16 %v649, %v648
          %v669 = vpack.c.b16 %v651, %v650
          %v670 = vpack.c.b16 %v653, %v652
          %v671 = vpack.c.b16 %v655, %v654
          %688 = vmatpush.bf16.msra.mxu0 %v663
          %689 = vmatpush.bf16.msra.mxu0 %v662
          %690 = vmatpush.bf16.msra.mxu0 %v661
          %691 = vmatpush.bf16.msra.mxu0 %v660
          %692 = vmatpush.bf16.msra.mxu0 %v659
          %693 = vmatpush.bf16.msra.mxu0 %v658
          %694 = vmatpush.bf16.msra.mxu0 %v657
          %695 = vmatpush.bf16.msra.mxu0 %v656
          %696 = vmatmul.bf16.gmra.mxu0 %v588
          %v697 = vpop.f32.mrf.mxu0
          %v698 = vadd.f32 0.0, %v697
          %v699 = vpop.f32.mrf.mxu0
          %v700 = vadd.f32 0.0, %v699
          %701 = vdwg.mxu0
          %702 = vmatpush.bf16.msra.mxu0 %v671
          %703 = vmatpush.bf16.msra.mxu0 %v670
          %704 = vmatpush.bf16.msra.mxu0 %v669
          %705 = vmatpush.bf16.msra.mxu0 %v668
          %706 = vmatpush.bf16.msra.mxu0 %v667
          %707 = vmatpush.bf16.msra.mxu0 %v666
          %708 = vmatpush.bf16.msra.mxu0 %v665
          %709 = vmatpush.bf16.msra.mxu0 %v664
          %710 = vmatmul.bf16.gmra.mxu0 %v589
          %v711 = vpop.f32.mrf.mxu0
          %v712 = vadd.f32 %v698, %v711
          %v713 = vpop.f32.mrf.mxu0
          %v714 = vadd.f32 %v700, %v713
          %715 = vdwg.mxu0
          %v716 = vld [vmem:[#allocation5] sm:$0x1]
          %vm717 = vcmask 523264
          %v718 = vsel %vm717, %v712, 0.0
          %v719 = vsel %vm717, %v714, 0.0
          %v720 = vadd.f32 %v718, %v719
          %v721 = vrot.slane %v720, 4
          %v722 = vadd.f32 %v720, %v721
          %v723 = vrot.slane %v722, 2
          %v724 = vadd.f32 %v722, %v723
          %v725 = vrot.slane %v724, 1
          %v726 = vadd.f32 %v724, %v725
          %v727 = vadd.f32 %v716, %v726
          %vm728 = vcmask 516096
          %729 = vst.msk [vmem:[#allocation5] sm:$0x1] %vm728, %v727
          %v730 = vld [vmem:[#allocation5 + $0x1] sm:$0x1]
          %v731 = vmul.f32 %v712, %v712
          %v732 = vmul.f32 %v714, %v714
          %v733 = vsel %vm717, %v731, 0.0
          %v734 = vsel %vm717, %v732, 0.0
          %v735 = vadd.f32 %v733, %v734
          %v736 = vrot.slane %v735, 4
          %v737 = vadd.f32 %v735, %v736
          %v738 = vrot.slane %v737, 2
          %v739 = vadd.f32 %v737, %v738
          %v740 = vrot.slane %v739, 1
          %v741 = vadd.f32 %v739, %v740
          %v742 = vadd.f32 %v730, %v741
          %743 = vst.msk [vmem:[#allocation5 + $0x1] sm:$0x1] %vm728, %v742
          %s744 = smul.u32 %s34, 24
          %s745 = scalar_lea.vmem [#allocation2], %s744
          %746 = vst.msk [vmem:[%s745 + $0x1] sm:$0xff] %vm717, %v712
          %747 = vst.msk [vmem:[%s745 + $0x9] sm:$0xff] %vm717, %v714
        $region92: #{tpu_custom_call.1} parent=67 // pred_fallthru
          _
        %p748 = scmp.eq.s32.totalorder %s33, 1
        %p749 = pnand %p748, %p529
        %p750 = pneg %p749
        // Predicated region
        $region93: #{tpu_custom_call.1} parent=67 // pred_check
          _
        $region94: #{tpu_custom_call.1} parent=67 // pred_check_branch
          %752 = sbr.rel (%p749) target = $region96
        $region95: #{tpu_custom_call.1} parent=67 // pred_region
          %v753 = vld [vmem:[#allocation5] sm:$0x1]
          %v754 = vld [vmem:[#allocation5 + $0x1] sm:$0x1]
          %v755 = vld [vmem:[#allocation8] sm:$0xff]
          %v756 = vld [vmem:[#allocation8 + $0x8] sm:$0xff]
          %v757 = vld [vmem:[#allocation8 + $0x10] sm:$0xff]
          %v758 = vld [vmem:[#allocation8 + $0x18] sm:$0xff]
          %v759 = vld [vmem:[#allocation8 + $0x20] sm:$0xff]
          %v760 = vld [vmem:[#allocation8 + $0x28] sm:$0xff]
          %v761 = vld [vmem:[#allocation8 + $0x30] sm:$0xff]
          %v762 = vld [vmem:[#allocation8 + $0x38] sm:$0xff]
          %vm763 = vcmask 523264
          %v765 = vsel %vm763, %v753, 0
          %767 = vmatpush.msra.mxu0 0.0
          %768 = vmatpush.msra.mxu0 0.0
          %769 = vmatpush.msra.mxu0 0.0
          %770 = vmatpush.msra.mxu0 0.0
          %771 = vmatpush.msra.mxu0 0.0
          %772 = vmatpush.msra.mxu0 0.0
          %773 = vmatpush.msra.mxu0 0.0
          %774 = vmatpush.msra.mxu0 0.0
          %775 = vmatpush.msra.mxu0 %v762
          %776 = vmatpush.msra.mxu0 %v761
          %777 = vmatpush.msra.mxu0 %v760
          %778 = vmatpush.msra.mxu0 %v759
          %779 = vmatpush.msra.mxu0 %v758
          %780 = vmatpush.msra.mxu0 %v757
          %781 = vmatpush.msra.mxu0 %v756
          %782 = vmatpush.msra.mxu0 %v755
          %783 = vmatmul.f32.gmra.mxu0 %v765
          %v784 = vpop.f32.mrf.mxu0
          %v785 = vadd.f32 0.0, %v784
          %786 = vdwg.mxu0
          %v787 = vrcp.pop 512.0
          %v788 = vmul.f32 512.0, %v787
          %v789 = vsub.f32 1.0, %v788
          %v790 = vmul.f32 %v787, %v789
          %v791 = vadd.f32 %v787, %v790
          %vm792 = vweird.f32 %v787
          %v793 = vsel %vm792, %v787, %v791
          %v794 = vmul.f32 %v785, %v793
          %v796 = vsel %vm763, %v754, 0
          %798 = vmatpush.msra.mxu0 0.0
          %799 = vmatpush.msra.mxu0 0.0
          %800 = vmatpush.msra.mxu0 0.0
          %801 = vmatpush.msra.mxu0 0.0
          %802 = vmatpush.msra.mxu0 0.0
          %803 = vmatpush.msra.mxu0 0.0
          %804 = vmatpush.msra.mxu0 0.0
          %805 = vmatpush.msra.mxu0 0.0
          %806 = vmatpush.msra.mxu0 %v762
          %807 = vmatpush.msra.mxu0 %v761
          %808 = vmatpush.msra.mxu0 %v760
          %809 = vmatpush.msra.mxu0 %v759
          %810 = vmatpush.msra.mxu0 %v758
          %811 = vmatpush.msra.mxu0 %v757
          %812 = vmatpush.msra.mxu0 %v756
          %813 = vmatpush.msra.mxu0 %v755
          %814 = vmatmul.f32.gmra.mxu0 %v796
          %v815 = vpop.f32.mrf.mxu0
          %v816 = vadd.f32 0.0, %v815
          %817 = vdwg.mxu0
          %v818 = vmul.f32 %v816, %v793
          %v819 = vmul.f32 %v794, %v794
          %v820 = vsub.f32 %v818, %v819
          %v821 = vmax.f32 %v820, 0.0
          %v822 = vadd.f32 %v821, 1e-05
          %v823 = vrsqrt.pop %v822
          %v824 = vmul.f32 %v823, %v822
          %v825 = vmul.f32 %v824, %v823
          %v826 = vmul.f32 0.5, %v825
          %v827 = vsub.f32 1.5, %v826
          %v828 = vmul.f32 %v823, %v827
          %vm829 = vweird.f32 %v822
          %vm830 = vweird.f32 %v823
          %vm831 = vmor %vm829, %vm830
          %v832 = vsel %vm831, %v823, %v828
          %v833 = vld [vmem:[%s6] sm:$0x1]
          %v834 = vmul.f32 %v832, %v833
          %v835 = vld [vmem:[#allocation13] sm:$0x1]
          %v836 = vmul.f32 %v794, %v834
          %v837 = vsub.f32 %v835, %v836
          %vm838 = vcmask 516096
          %839 = vst.msk [vmem:[#allocation5] sm:$0x1] %vm838, %v834
          %840 = vst.msk [vmem:[#allocation5 + $0x1] sm:$0x1] %vm838, %v837
        $region96: #{tpu_custom_call.1} parent=67 // pred_fallthru
          _
        // Predicated region
        $region97: #{tpu_custom_call.1} parent=67 // pred_check
          %p841 = pneg %p748
        $region98: #{tpu_custom_call.1} parent=67 // pred_check_branch
          %843 = sbr.rel (%p841) target = $region100
        $region99: #{tpu_custom_call.1} parent=67 // pred_region
          %v844 = vld [vmem:[#allocation5] sm:$0x1]
          %v845 = vld [vmem:[#allocation5 + $0x1] sm:$0x1]
          %s846 = smul.u32 %s34, 24
          %s847 = scalar_lea.vmem [#allocation2], %s846
          %v848 = vld [vmem:[%s847 + $0x1] sm:$0xff]
          %v849 = vld [vmem:[%s847 + $0x9] sm:$0xff]
          %v850 = vperm.slane %v844, 0
          %v851 = vmul.f32 %v848, %v850
          %v852 = vmul.f32 %v849, %v850
          %v853 = vperm.slane %v845, 0
          %v854 = vadd.f32 %v851, %v853
          %v855 = vadd.f32 %v852, %v853
          %v856 = vmax.f32 %v854, 0.0
          %v857 = vmax.f32 %v855, 0.0
          %vm858 = vcmask 523264
          %859 = vst.msk [vmem:[%s847 + $0x1] sm:$0xff] %vm858, %v856
          %860 = vst.msk [vmem:[%s847 + $0x9] sm:$0xff] %vm858, %v857
          %v861 = vld [vmem:[%s847] sm:$0xff]
          %v862 = vld [vmem:[%s847 + $0x8] sm:$0xff]
          %v863 = vpack.c.bf16 %v862, %v861
          %v864 = vld [vmem:[%s2] sm:$0xf]
          %v865 = vld [vmem:[%s2 + $0x4] sm:$0xf]
          %v866 = vld [vmem:[%s2 + $0x8] sm:$0xf]
          %v867 = vld [vmem:[%s2 + $0xc] sm:$0xf]
          %v868 = vld [vmem:[%s2 + $0x10] sm:$0xf]
          %v869 = vld [vmem:[%s2 + $0x14] sm:$0xf]
          %v870 = vld [vmem:[%s2 + $0x18] sm:$0xf]
          %v871 = vld [vmem:[%s2 + $0x1c] sm:$0xf]
          %v872 = vpack.c.bf16 %v857, %v856
          %s873 = scalar_lea.vmem %s2, 32
          %v874 = vld [vmem:[%s873] sm:$0xf]
          %v875 = vld [vmem:[%s873 + $0x4] sm:$0xf]
          %v876 = vld [vmem:[%s873 + $0x8] sm:$0xf]
          %v877 = vld [vmem:[%s873 + $0xc] sm:$0xf]
          %v878 = vld [vmem:[%s873 + $0x10] sm:$0xf]
          %v879 = vld [vmem:[%s873 + $0x14] sm:$0xf]
          %v880 = vld [vmem:[%s873 + $0x18] sm:$0xf]
          %v881 = vld [vmem:[%s873 + $0x1c] sm:$0xf]
          %v890 = vunpack.c.l.b16 %v874
          %v891 = vunpack.c.l.b16 %v875
          %v892 = vunpack.c.l.b16 %v876
          %v893 = vunpack.c.l.b16 %v877
          %v894 = vunpack.c.l.b16 %v878
          %v895 = vunpack.c.l.b16 %v879
          %v896 = vunpack.c.l.b16 %v880
          %v897 = vunpack.c.l.b16 %v881
          %v898 = vpack.c.b16 %v891, %v890
          %v899 = vpack.c.b16 %v893, %v892
          %v900 = vpack.c.b16 %v895, %v894
          %v901 = vpack.c.b16 %v897, %v896
          %v907 = vsel %vm858, %v872, 0
          %909 = vmatpush.bf16.msra.mxu0 0
          %910 = vmatpush.bf16.msra.mxu0 0
          %911 = vmatpush.bf16.msra.mxu0 0
          %912 = vmatpush.bf16.msra.mxu0 0
          %913 = vmatpush.bf16.msra.mxu0 %v901
          %914 = vmatpush.bf16.msra.mxu0 %v900
          %915 = vmatpush.bf16.msra.mxu0 %v899
          %916 = vmatpush.bf16.msra.mxu0 %v898
          %917 = vmatmul.bf16.gmra.mxu0 %v907
          %v918 = vpop.f32.mrf.mxu0
          %v919 = vadd.f32 0.0, %v918
          %v920 = vpop.f32.mrf.mxu0
          %v921 = vadd.f32 0.0, %v920
          %922 = vdwg.mxu0
          %v931 = vunpack.c.l.b16 %v864
          %v932 = vunpack.c.l.b16 %v865
          %v933 = vunpack.c.l.b16 %v866
          %v934 = vunpack.c.l.b16 %v867
          %v935 = vunpack.c.l.b16 %v868
          %v936 = vunpack.c.l.b16 %v869
          %v937 = vunpack.c.l.b16 %v870
          %v938 = vunpack.c.l.b16 %v871
          %v939 = vpack.c.b16 %v932, %v931
          %v940 = vpack.c.b16 %v934, %v933
          %v941 = vpack.c.b16 %v936, %v935
          %v942 = vpack.c.b16 %v938, %v937
          %v948 = vsel %vm858, %v863, 0
          %950 = vmatpush.bf16.msra.mxu0 0
          %951 = vmatpush.bf16.msra.mxu0 0
          %952 = vmatpush.bf16.msra.mxu0 0
          %953 = vmatpush.bf16.msra.mxu0 0
          %954 = vmatpush.bf16.msra.mxu0 %v942
          %955 = vmatpush.bf16.msra.mxu0 %v941
          %956 = vmatpush.bf16.msra.mxu0 %v940
          %957 = vmatpush.bf16.msra.mxu0 %v939
          %958 = vmatmul.bf16.gmra.mxu0 %v948
          %v959 = vpop.f32.mrf.mxu0
          %v960 = vadd.f32 %v919, %v959
          %v961 = vpop.f32.mrf.mxu0
          %v962 = vadd.f32 %v921, %v961
          %963 = vdwg.mxu0
          %v964 = vld [vmem:[%s847 + $0x2] sm:$0xff]
          %v965 = vld [vmem:[%s847 + $0xa] sm:$0xff]
          %v966 = vpack.c.bf16 %v965, %v964
          %s967 = scalar_lea.vmem %s2, 64
          %v968 = vld [vmem:[%s967] sm:$0xf]
          %v969 = vld [vmem:[%s967 + $0x4] sm:$0xf]
          %v970 = vld [vmem:[%s967 + $0x8] sm:$0xf]
          %v971 = vld [vmem:[%s967 + $0xc] sm:$0xf]
          %v972 = vld [vmem:[%s967 + $0x10] sm:$0xf]
          %v973 = vld [vmem:[%s967 + $0x14] sm:$0xf]
          %v974 = vld [vmem:[%s967 + $0x18] sm:$0xf]
          %v975 = vld [vmem:[%s967 + $0x1c] sm:$0xf]
          %v984 = vunpack.c.l.b16 %v968
          %v985 = vunpack.c.l.b16 %v969
          %v986 = vunpack.c.l.b16 %v970
          %v987 = vunpack.c.l.b16 %v971
          %v988 = vunpack.c.l.b16 %v972
          %v989 = vunpack.c.l.b16 %v973
          %v990 = vunpack.c.l.b16 %v974
          %v991 = vunpack.c.l.b16 %v975
          %v992 = vpack.c.b16 %v985, %v984
          %v993 = vpack.c.b16 %v987, %v986
          %v994 = vpack.c.b16 %v989, %v988
          %v995 = vpack.c.b16 %v991, %v990
          %v1001 = vsel %vm858, %v966, 0
          %1003 = vmatpush.bf16.msra.mxu0 0
          %1004 = vmatpush.bf16.msra.mxu0 0
          %1005 = vmatpush.bf16.msra.mxu0 0
          %1006 = vmatpush.bf16.msra.mxu0 0
          %1007 = vmatpush.bf16.msra.mxu0 %v995
          %1008 = vmatpush.bf16.msra.mxu0 %v994
          %1009 = vmatpush.bf16.msra.mxu0 %v993
          %1010 = vmatpush.bf16.msra.mxu0 %v992
          %1011 = vmatmul.bf16.gmra.mxu0 %v1001
          %v1012 = vpop.f32.mrf.mxu0
          %v1013 = vadd.f32 0.0, %v1012
          %v1014 = vpop.f32.mrf.mxu0
          %v1015 = vadd.f32 0.0, %v1014
          %1016 = vdwg.mxu0
          %v1017 = vadd.f32 %v960, %v1013
          %v1018 = vadd.f32 %v962, %v1015
          %v1019 = vld [vmem:[#allocation6] sm:$0x1]
          %v1020 = vsel %vm858, %v1017, 0.0
          %v1021 = vsel %vm858, %v1018, 0.0
          %v1022 = vadd.f32 %v1020, %v1021
          %v1023 = vrot.slane %v1022, 4
          %v1024 = vadd.f32 %v1022, %v1023
          %v1025 = vrot.slane %v1024, 2
          %v1026 = vadd.f32 %v1024, %v1025
          %v1027 = vrot.slane %v1026, 1
          %v1028 = vadd.f32 %v1026, %v1027
          %v1029 = vadd.f32 %v1019, %v1028
          %vm1030 = vcmask 516096
          %1031 = vst.msk [vmem:[#allocation6] sm:$0x1] %vm1030, %v1029
          %v1032 = vld [vmem:[#allocation6 + $0x1] sm:$0x1]
          %v1033 = vmul.f32 %v1017, %v1017
          %v1034 = vmul.f32 %v1018, %v1018
          %v1035 = vsel %vm858, %v1033, 0.0
          %v1036 = vsel %vm858, %v1034, 0.0
          %v1037 = vadd.f32 %v1035, %v1036
          %v1038 = vrot.slane %v1037, 4
          %v1039 = vadd.f32 %v1037, %v1038
          %v1040 = vrot.slane %v1039, 2
          %v1041 = vadd.f32 %v1039, %v1040
          %v1042 = vrot.slane %v1041, 1
          %v1043 = vadd.f32 %v1041, %v1042
          %v1044 = vadd.f32 %v1032, %v1043
          %1045 = vst.msk [vmem:[#allocation6 + $0x1] sm:$0x1] %vm1030, %v1044
          %s1046 = smul.u32 %s34, 16
          %s1047 = scalar_lea.vmem [#allocation3], %s1046
          %1048 = vst.msk [vmem:[%s1047] sm:$0xff] %vm858, %v1017
          %1049 = vst.msk [vmem:[%s1047 + $0x8] sm:$0xff] %vm858, %v1018
        $region100: #{tpu_custom_call.1} parent=67 // pred_fallthru
          _
        %p1050 = scmp.eq.s32.totalorder %s33, 2
        %p1051 = pnand %p1050, %p529
        %p1052 = pneg %p1051
        // Predicated region
        $region101: #{tpu_custom_call.1} parent=67 // pred_check
          _
        $region102: #{tpu_custom_call.1} parent=67 // pred_check_branch
          %1054 = sbr.rel (%p1051) target = $region104
        $region103: #{tpu_custom_call.1} parent=67 // pred_region
          %v1055 = vld [vmem:[#allocation6] sm:$0x1]
          %v1056 = vld [vmem:[#allocation6 + $0x1] sm:$0x1]
          %v1057 = vld [vmem:[#allocation8] sm:$0xff]
          %v1058 = vld [vmem:[#allocation8 + $0x8] sm:$0xff]
          %v1059 = vld [vmem:[#allocation8 + $0x10] sm:$0xff]
          %v1060 = vld [vmem:[#allocation8 + $0x18] sm:$0xff]
          %v1061 = vld [vmem:[#allocation8 + $0x20] sm:$0xff]
          %v1062 = vld [vmem:[#allocation8 + $0x28] sm:$0xff]
          %v1063 = vld [vmem:[#allocation8 + $0x30] sm:$0xff]
          %v1064 = vld [vmem:[#allocation8 + $0x38] sm:$0xff]
          %vm1065 = vcmask 523264
          %v1067 = vsel %vm1065, %v1055, 0
          %1069 = vmatpush.msra.mxu0 0.0
          %1070 = vmatpush.msra.mxu0 0.0
          %1071 = vmatpush.msra.mxu0 0.0
          %1072 = vmatpush.msra.mxu0 0.0
          %1073 = vmatpush.msra.mxu0 0.0
          %1074 = vmatpush.msra.mxu0 0.0
          %1075 = vmatpush.msra.mxu0 0.0
          %1076 = vmatpush.msra.mxu0 0.0
          %1077 = vmatpush.msra.mxu0 %v1064
          %1078 = vmatpush.msra.mxu0 %v1063
          %1079 = vmatpush.msra.mxu0 %v1062
          %1080 = vmatpush.msra.mxu0 %v1061
          %1081 = vmatpush.msra.mxu0 %v1060
          %1082 = vmatpush.msra.mxu0 %v1059
          %1083 = vmatpush.msra.mxu0 %v1058
          %1084 = vmatpush.msra.mxu0 %v1057
          %1085 = vmatmul.f32.gmra.mxu0 %v1067
          %v1086 = vpop.f32.mrf.mxu0
          %v1087 = vadd.f32 0.0, %v1086
          %1088 = vdwg.mxu0
          %v1089 = vrcp.pop 512.0
          %v1090 = vmul.f32 512.0, %v1089
          %v1091 = vsub.f32 1.0, %v1090
          %v1092 = vmul.f32 %v1089, %v1091
          %v1093 = vadd.f32 %v1089, %v1092
          %vm1094 = vweird.f32 %v1089
          %v1095 = vsel %vm1094, %v1089, %v1093
          %v1096 = vmul.f32 %v1087, %v1095
          %v1098 = vsel %vm1065, %v1056, 0
          %1100 = vmatpush.msra.mxu0 0.0
          %1101 = vmatpush.msra.mxu0 0.0
          %1102 = vmatpush.msra.mxu0 0.0
          %1103 = vmatpush.msra.mxu0 0.0
          %1104 = vmatpush.msra.mxu0 0.0
          %1105 = vmatpush.msra.mxu0 0.0
          %1106 = vmatpush.msra.mxu0 0.0
          %1107 = vmatpush.msra.mxu0 0.0
          %1108 = vmatpush.msra.mxu0 %v1064
          %1109 = vmatpush.msra.mxu0 %v1063
          %1110 = vmatpush.msra.mxu0 %v1062
          %1111 = vmatpush.msra.mxu0 %v1061
          %1112 = vmatpush.msra.mxu0 %v1060
          %1113 = vmatpush.msra.mxu0 %v1059
          %1114 = vmatpush.msra.mxu0 %v1058
          %1115 = vmatpush.msra.mxu0 %v1057
          %1116 = vmatmul.f32.gmra.mxu0 %v1098
          %v1117 = vpop.f32.mrf.mxu0
          %v1118 = vadd.f32 0.0, %v1117
          %1119 = vdwg.mxu0
          %v1120 = vmul.f32 %v1118, %v1095
          %v1121 = vmul.f32 %v1096, %v1096
          %v1122 = vsub.f32 %v1120, %v1121
          %v1123 = vmax.f32 %v1122, 0.0
          %v1124 = vadd.f32 %v1123, 1e-05
          %v1125 = vrsqrt.pop %v1124
          %v1126 = vmul.f32 %v1125, %v1124
          %v1127 = vmul.f32 %v1126, %v1125
          %v1128 = vmul.f32 0.5, %v1127
          %v1129 = vsub.f32 1.5, %v1128
          %v1130 = vmul.f32 %v1125, %v1129
          %vm1131 = vweird.f32 %v1124
          %vm1132 = vweird.f32 %v1125
          %vm1133 = vmor %vm1131, %vm1132
          %v1134 = vsel %vm1133, %v1125, %v1130
          %v1135 = vld [vmem:[#allocation14] sm:$0x1]
          %v1136 = vmul.f32 %v1134, %v1135
          %v1137 = vld [vmem:[%s9] sm:$0x1]
          %v1138 = vmul.f32 %v1096, %v1136
          %v1139 = vsub.f32 %v1137, %v1138
          %vm1140 = vcmask 516096
          %1141 = vst.msk [vmem:[#allocation6] sm:$0x1] %vm1140, %v1136
          %1142 = vst.msk [vmem:[#allocation6 + $0x1] sm:$0x1] %vm1140, %v1139
        $region104: #{tpu_custom_call.1} parent=67 // pred_fallthru
          _
        // Predicated region
        $region105: #{tpu_custom_call.1} parent=67 // pred_check
          %p1143 = pneg %p1050
        $region106: #{tpu_custom_call.1} parent=67 // pred_check_branch
          %1145 = sbr.rel (%p1143) target = $region108
        $region107: #{tpu_custom_call.1} parent=67 // pred_region
          %v1146 = vld [vmem:[#allocation6] sm:$0x1]
          %v1147 = vld [vmem:[#allocation6 + $0x1] sm:$0x1]
          %s1148 = smul.u32 %s34, 16
          %s1149 = scalar_lea.vmem [#allocation3], %s1148
          %v1150 = vld [vmem:[%s1149] sm:$0xff]
          %v1151 = vld [vmem:[%s1149 + $0x8] sm:$0xff]
          %v1152 = vperm.slane %v1146, 0
          %v1153 = vmul.f32 %v1150, %v1152
          %v1154 = vmul.f32 %v1151, %v1152
          %v1155 = vperm.slane %v1147, 0
          %v1156 = vadd.f32 %v1153, %v1155
          %v1157 = vadd.f32 %v1154, %v1155
          %v1158 = vmax.f32 %v1156, 0.0
          %v1159 = vmax.f32 %v1157, 0.0
          %v1160 = vpack.c.bf16 %v1159, %v1158
          %v1161 = vld [vmem:[%s3] sm:$0xff]
          %v1162 = vld [vmem:[%s3 + $0x8] sm:$0xff]
          %v1163 = vld [vmem:[%s3 + $0x10] sm:$0xff]
          %v1164 = vld [vmem:[%s3 + $0x18] sm:$0xff]
          %v1165 = vld [vmem:[%s3 + $0x20] sm:$0xff]
          %v1166 = vld [vmem:[%s3 + $0x28] sm:$0xff]
          %v1167 = vld [vmem:[%s3 + $0x30] sm:$0xff]
          %v1168 = vld [vmem:[%s3 + $0x38] sm:$0xff]
          %v1177 = vunpack.c.l.b16 %v1161
          %v1178 = vunpack.c.h.b16 %v1161
          %v1179 = vunpack.c.l.b16 %v1162
          %v1180 = vunpack.c.h.b16 %v1162
          %v1181 = vunpack.c.l.b16 %v1163
          %v1182 = vunpack.c.h.b16 %v1163
          %v1183 = vunpack.c.l.b16 %v1164
          %v1184 = vunpack.c.h.b16 %v1164
          %v1185 = vunpack.c.l.b16 %v1165
          %v1186 = vunpack.c.h.b16 %v1165
          %v1187 = vunpack.c.l.b16 %v1166
          %v1188 = vunpack.c.h.b16 %v1166
          %v1189 = vunpack.c.l.b16 %v1167
          %v1190 = vunpack.c.h.b16 %v1167
          %v1191 = vunpack.c.l.b16 %v1168
          %v1192 = vunpack.c.h.b16 %v1168
          %v1193 = vpack.c.b16 %v1179, %v1177
          %v1194 = vpack.c.b16 %v1180, %v1178
          %v1195 = vpack.c.b16 %v1183, %v1181
          %v1196 = vpack.c.b16 %v1184, %v1182
          %v1197 = vpack.c.b16 %v1187, %v1185
          %v1198 = vpack.c.b16 %v1188, %v1186
          %v1199 = vpack.c.b16 %v1191, %v1189
          %v1200 = vpack.c.b16 %v1192, %v1190
          %vm1209 = vcmask 523264
          %v1211 = vsel %vm1209, %v1160, 0
          %1213 = vmatpush.bf16.msra.mxu0 0
          %1214 = vmatpush.bf16.msra.mxu0 0
          %1215 = vmatpush.bf16.msra.mxu0 0
          %1216 = vmatpush.bf16.msra.mxu0 0
          %1217 = vmatpush.bf16.msra.mxu0 %v1199
          %1218 = vmatpush.bf16.msra.mxu0 %v1197
          %1219 = vmatpush.bf16.msra.mxu0 %v1195
          %1220 = vmatpush.bf16.msra.mxu0 %v1193
          %1221 = vmatmul.bf16.gmra.mxu0 %v1211
          %v1222 = vpop.f32.mrf.mxu0
          %v1223 = vadd.f32 0.0, %v1222
          %v1224 = vpop.f32.mrf.mxu0
          %v1225 = vadd.f32 0.0, %v1224
          %1226 = vdwg.mxu0
          %1227 = vmatpush.bf16.msra.mxu0 0
          %1228 = vmatpush.bf16.msra.mxu0 0
          %1229 = vmatpush.bf16.msra.mxu0 0
          %1230 = vmatpush.bf16.msra.mxu0 0
          %1231 = vmatpush.bf16.msra.mxu0 %v1200
          %1232 = vmatpush.bf16.msra.mxu0 %v1198
          %1233 = vmatpush.bf16.msra.mxu0 %v1196
          %1234 = vmatpush.bf16.msra.mxu0 %v1194
          %1235 = vmatmul.bf16.gmra.mxu0 %v1211
          %v1236 = vpop.f32.mrf.mxu0
          %v1237 = vadd.f32 0.0, %v1236
          %v1238 = vpop.f32.mrf.mxu0
          %v1239 = vadd.f32 0.0, %v1238
          %1240 = vdwg.mxu0
          %v1241 = vld [vmem:[#allocation7] ss:$2 sm:$0x3]
          %v1242 = vadd.f32 %v1223, %v1225
          %v1243 = vrot.slane %v1242, 4
          %v1244 = vadd.f32 %v1242, %v1243
          %v1245 = vrot.slane %v1244, 2
          %v1246 = vadd.f32 %v1244, %v1245
          %v1247 = vrot.slane %v1246, 1
          %v1248 = vadd.f32 %v1246, %v1247
          %v1249 = vadd.f32 %v1237, %v1239
          %v1250 = vrot.slane %v1249, 4
          %v1251 = vadd.f32 %v1249, %v1250
          %v1252 = vrot.slane %v1251, 2
          %v1253 = vadd.f32 %v1251, %v1252
          %v1254 = vrot.slane %v1253, 1
          %v1255 = vadd.f32 %v1253, %v1254
          %v1258 = vrot.slane %v1255, 7
          %vm1259 = vcmask 1040384
          %v1260 = vsel %vm1259, %v1248, %v1258
          %v1262 = vadd.f32 %v1241, %v1260
          %v1263 = vlaneseq
          %vm1264 = vcmp.ge.s32.totalorder %v1263, 0
          %vm1265 = vcmp.lt.s32.totalorder %v1263, 256
          %vm1266 = vmand %vm1264, %vm1265
          %1267 = vst.msk [vmem:[#allocation7] ss:$2 sm:$0x3] %vm1266, %v1262
          %s1268 = scalar_lea.vmem [#allocation7], 1
          %v1269 = vld [vmem:[%s1268] ss:$2 sm:$0x3]
          %v1270 = vmul.f32 %v1223, %v1223
          %v1271 = vmul.f32 %v1237, %v1237
          %v1272 = vmul.f32 %v1225, %v1225
          %v1273 = vmul.f32 %v1239, %v1239
          %v1274 = vadd.f32 %v1270, %v1272
          %v1275 = vrot.slane %v1274, 4
          %v1276 = vadd.f32 %v1274, %v1275
          %v1277 = vrot.slane %v1276, 2
          %v1278 = vadd.f32 %v1276, %v1277
          %v1279 = vrot.slane %v1278, 1
          %v1280 = vadd.f32 %v1278, %v1279
          %v1281 = vadd.f32 %v1271, %v1273
          %v1282 = vrot.slane %v1281, 4
          %v1283 = vadd.f32 %v1281, %v1282
          %v1284 = vrot.slane %v1283, 2
          %v1285 = vadd.f32 %v1283, %v1284
          %v1286 = vrot.slane %v1285, 1
          %v1287 = vadd.f32 %v1285, %v1286
          %v1290 = vrot.slane %v1287, 7
          %v1291 = vsel %vm1259, %v1280, %v1290
          %v1293 = vadd.f32 %v1269, %v1291
          %1294 = vst.msk [vmem:[%s1268] ss:$2 sm:$0x3] %vm1266, %v1293
          %s1295 = smul.u32 %s34, 4
          %s1296 = smul.addr %s1295, 8
          %s1297 = scalar_lea.vmem [#allocation4], %s1296
          %1298 = vst [vmem:[%s1297] sm:$0xff] %v1223
          %1299 = vst [vmem:[%s1297 + $0x8] sm:$0xff] %v1237
          %1300 = vst [vmem:[%s1297 + $0x10] sm:$0xff] %v1225
          %1301 = vst [vmem:[%s1297 + $0x18] sm:$0xff] %v1239
        $region108: #{tpu_custom_call.1} parent=67 // pred_fallthru
          _
        %p1302 = scmp.eq.s32.totalorder %s33, 3
        %p1303 = pnand %p1302, %p529
        %p1304 = pneg %p1303
        // Predicated region
        $region109: #{tpu_custom_call.1} parent=67 // pred_check
          _
        $region110: #{tpu_custom_call.1} parent=67 // pred_check_branch
          %1306 = sbr.rel (%p1303) target = $region112
        $region111: #{tpu_custom_call.1} parent=67 // pred_region
          %v1307 = vld [vmem:[#allocation7] ss:$2 sm:$0x3]
          %s1308 = scalar_lea.vmem [#allocation7], 1
          %v1309 = vld [vmem:[%s1308] ss:$2 sm:$0x3]
          %v1310 = vld [vmem:[#allocation11] sm:$0xff]
          %v1311 = vld [vmem:[#allocation11 + $0x8] sm:$0xff]
          %v1312 = vld [vmem:[#allocation11 + $0x10] sm:$0xff]
          %v1313 = vld [vmem:[#allocation11 + $0x18] sm:$0xff]
          %v1314 = vld [vmem:[#allocation11 + $0x20] sm:$0xff]
          %v1315 = vld [vmem:[#allocation11 + $0x28] sm:$0xff]
          %v1316 = vld [vmem:[#allocation11 + $0x30] sm:$0xff]
          %v1317 = vld [vmem:[#allocation11 + $0x38] sm:$0xff]
          %v1318 = vld [vmem:[#allocation11 + $0x40] sm:$0xff]
          %v1319 = vld [vmem:[#allocation11 + $0x48] sm:$0xff]
          %v1320 = vld [vmem:[#allocation11 + $0x50] sm:$0xff]
          %v1321 = vld [vmem:[#allocation11 + $0x58] sm:$0xff]
          %v1322 = vld [vmem:[#allocation11 + $0x60] sm:$0xff]
          %v1323 = vld [vmem:[#allocation11 + $0x68] sm:$0xff]
          %v1324 = vld [vmem:[#allocation11 + $0x70] sm:$0xff]
          %v1325 = vld [vmem:[#allocation11 + $0x78] sm:$0xff]
          %v1326 = vld [vmem:[#allocation11 + $0x80] sm:$0xff]
          %v1327 = vld [vmem:[#allocation11 + $0x88] sm:$0xff]
          %v1328 = vld [vmem:[#allocation11 + $0x90] sm:$0xff]
          %v1329 = vld [vmem:[#allocation11 + $0x98] sm:$0xff]
          %v1330 = vld [vmem:[#allocation11 + $0xa0] sm:$0xff]
          %v1331 = vld [vmem:[#allocation11 + $0xa8] sm:$0xff]
          %v1332 = vld [vmem:[#allocation11 + $0xb0] sm:$0xff]
          %v1333 = vld [vmem:[#allocation11 + $0xb8] sm:$0xff]
          %v1334 = vld [vmem:[#allocation11 + $0xc0] sm:$0xff]
          %v1335 = vld [vmem:[#allocation11 + $0xc8] sm:$0xff]
          %v1336 = vld [vmem:[#allocation11 + $0xd0] sm:$0xff]
          %v1337 = vld [vmem:[#allocation11 + $0xd8] sm:$0xff]
          %v1338 = vld [vmem:[#allocation11 + $0xe0] sm:$0xff]
          %v1339 = vld [vmem:[#allocation11 + $0xe8] sm:$0xff]
          %v1340 = vld [vmem:[#allocation11 + $0xf0] sm:$0xff]
          %v1341 = vld [vmem:[#allocation11 + $0xf8] sm:$0xff]
          %v1342 = vld [vmem:[#allocation11 + $0x100] sm:$0xff]
          %v1343 = vld [vmem:[#allocation11 + $0x108] sm:$0xff]
          %v1344 = vld [vmem:[#allocation11 + $0x110] sm:$0xff]
          %v1345 = vld [vmem:[#allocation11 + $0x118] sm:$0xff]
          %v1346 = vld [vmem:[#allocation11 + $0x120] sm:$0xff]
          %v1347 = vld [vmem:[#allocation11 + $0x128] sm:$0xff]
          %v1348 = vld [vmem:[#allocation11 + $0x130] sm:$0xff]
          %v1349 = vld [vmem:[#allocation11 + $0x138] sm:$0xff]
          %v1350 = vld [vmem:[#allocation11 + $0x140] sm:$0xff]
          %v1351 = vld [vmem:[#allocation11 + $0x148] sm:$0xff]
          %v1352 = vld [vmem:[#allocation11 + $0x150] sm:$0xff]
          %v1353 = vld [vmem:[#allocation11 + $0x158] sm:$0xff]
          %v1354 = vld [vmem:[#allocation11 + $0x160] sm:$0xff]
          %v1355 = vld [vmem:[#allocation11 + $0x168] sm:$0xff]
          %v1356 = vld [vmem:[#allocation11 + $0x170] sm:$0xff]
          %v1357 = vld [vmem:[#allocation11 + $0x178] sm:$0xff]
          %v1358 = vld [vmem:[#allocation11 + $0x180] sm:$0xff]
          %v1359 = vld [vmem:[#allocation11 + $0x188] sm:$0xff]
          %v1360 = vld [vmem:[#allocation11 + $0x190] sm:$0xff]
          %v1361 = vld [vmem:[#allocation11 + $0x198] sm:$0xff]
          %v1362 = vld [vmem:[#allocation11 + $0x1a0] sm:$0xff]
          %v1363 = vld [vmem:[#allocation11 + $0x1a8] sm:$0xff]
          %v1364 = vld [vmem:[#allocation11 + $0x1b0] sm:$0xff]
          %v1365 = vld [vmem:[#allocation11 + $0x1b8] sm:$0xff]
          %v1366 = vld [vmem:[#allocation11 + $0x1c0] sm:$0xff]
          %v1367 = vld [vmem:[#allocation11 + $0x1c8] sm:$0xff]
          %v1368 = vld [vmem:[#allocation11 + $0x1d0] sm:$0xff]
          %v1369 = vld [vmem:[#allocation11 + $0x1d8] sm:$0xff]
          %v1370 = vld [vmem:[#allocation11 + $0x1e0] sm:$0xff]
          %v1371 = vld [vmem:[#allocation11 + $0x1e8] sm:$0xff]
          %v1372 = vld [vmem:[#allocation11 + $0x1f0] sm:$0xff]
          %v1373 = vld [vmem:[#allocation11 + $0x1f8] sm:$0xff]
          %v1375 = vperm.slane %v1307, 0
          %v1376 = vperm.slane %v1307, 1
          %1379 = vmatpush.msra.mxu0 %v1340
          %1380 = vmatpush.msra.mxu0 %v1338
          %1381 = vmatpush.msra.mxu0 %v1336
          %1382 = vmatpush.msra.mxu0 %v1334
          %1383 = vmatpush.msra.mxu0 %v1332
          %1384 = vmatpush.msra.mxu0 %v1330
          %1385 = vmatpush.msra.mxu0 %v1328
          %1386 = vmatpush.msra.mxu0 %v1326
          %1387 = vmatpush.msra.mxu0 %v1324
          %1388 = vmatpush.msra.mxu0 %v1322
          %1389 = vmatpush.msra.mxu0 %v1320
          %1390 = vmatpush.msra.mxu0 %v1318
          %1391 = vmatpush.msra.mxu0 %v1316
          %1392 = vmatpush.msra.mxu0 %v1314
          %1393 = vmatpush.msra.mxu0 %v1312
          %1394 = vmatpush.msra.mxu0 %v1310
          %1395 = vmatmul.f32.gmra.mxu0 %v1375
          %v1396 = vpop.f32.mrf.mxu0
          %v1397 = vadd.f32 0.0, %v1396
          %1398 = vdwg.mxu0
          %1399 = vmatpush.msra.mxu0 %v1372
          %1400 = vmatpush.msra.mxu0 %v1370
          %1401 = vmatpush.msra.mxu0 %v1368
          %1402 = vmatpush.msra.mxu0 %v1366
          %1403 = vmatpush.msra.mxu0 %v1364
          %1404 = vmatpush.msra.mxu0 %v1362
          %1405 = vmatpush.msra.mxu0 %v1360
          %1406 = vmatpush.msra.mxu0 %v1358
          %1407 = vmatpush.msra.mxu0 %v1356
          %1408 = vmatpush.msra.mxu0 %v1354
          %1409 = vmatpush.msra.mxu0 %v1352
          %1410 = vmatpush.msra.mxu0 %v1350
          %1411 = vmatpush.msra.mxu0 %v1348
          %1412 = vmatpush.msra.mxu0 %v1346
          %1413 = vmatpush.msra.mxu0 %v1344
          %1414 = vmatpush.msra.mxu0 %v1342
          %1415 = vmatmul.f32.gmra.mxu0 %v1376
          %v1416 = vpop.f32.mrf.mxu0
          %v1417 = vadd.f32 %v1397, %v1416
          %1418 = vdwg.mxu0
          %1419 = vmatpush.msra.mxu0 %v1341
          %1420 = vmatpush.msra.mxu0 %v1339
          %1421 = vmatpush.msra.mxu0 %v1337
          %1422 = vmatpush.msra.mxu0 %v1335
          %1423 = vmatpush.msra.mxu0 %v1333
          %1424 = vmatpush.msra.mxu0 %v1331
          %1425 = vmatpush.msra.mxu0 %v1329
          %1426 = vmatpush.msra.mxu0 %v1327
          %1427 = vmatpush.msra.mxu0 %v1325
          %1428 = vmatpush.msra.mxu0 %v1323
          %1429 = vmatpush.msra.mxu0 %v1321
          %1430 = vmatpush.msra.mxu0 %v1319
          %1431 = vmatpush.msra.mxu0 %v1317
          %1432 = vmatpush.msra.mxu0 %v1315
          %1433 = vmatpush.msra.mxu0 %v1313
          %1434 = vmatpush.msra.mxu0 %v1311
          %1435 = vmatmul.f32.gmra.mxu0 %v1375
          %v1436 = vpop.f32.mrf.mxu0
          %v1437 = vadd.f32 0.0, %v1436
          %1438 = vdwg.mxu0
          %1439 = vmatpush.msra.mxu0 %v1373
          %1440 = vmatpush.msra.mxu0 %v1371
          %1441 = vmatpush.msra.mxu0 %v1369
          %1442 = vmatpush.msra.mxu0 %v1367
          %1443 = vmatpush.msra.mxu0 %v1365
          %1444 = vmatpush.msra.mxu0 %v1363
          %1445 = vmatpush.msra.mxu0 %v1361
          %1446 = vmatpush.msra.mxu0 %v1359
          %1447 = vmatpush.msra.mxu0 %v1357
          %1448 = vmatpush.msra.mxu0 %v1355
          %1449 = vmatpush.msra.mxu0 %v1353
          %1450 = vmatpush.msra.mxu0 %v1351
          %1451 = vmatpush.msra.mxu0 %v1349
          %1452 = vmatpush.msra.mxu0 %v1347
          %1453 = vmatpush.msra.mxu0 %v1345
          %1454 = vmatpush.msra.mxu0 %v1343
          %1455 = vmatmul.f32.gmra.mxu0 %v1376
          %v1456 = vpop.f32.mrf.mxu0
          %v1457 = vadd.f32 %v1437, %v1456
          %1458 = vdwg.mxu0
          %v1459 = vrcp.pop 512.0
          %v1460 = vmul.f32 512.0, %v1459
          %v1461 = vsub.f32 1.0, %v1460
          %v1462 = vmul.f32 %v1459, %v1461
          %v1463 = vadd.f32 %v1459, %v1462
          %vm1464 = vweird.f32 %v1459
          %v1465 = vsel %vm1464, %v1459, %v1463
          %v1466 = vmul.f32 %v1417, %v1465
          %v1467 = vmul.f32 %v1457, %v1465
          %v1469 = vperm.slane %v1309, 0
          %v1470 = vperm.slane %v1309, 1
          %1473 = vmatpush.msra.mxu0 %v1340
          %1474 = vmatpush.msra.mxu0 %v1338
          %1475 = vmatpush.msra.mxu0 %v1336
          %1476 = vmatpush.msra.mxu0 %v1334
          %1477 = vmatpush.msra.mxu0 %v1332
          %1478 = vmatpush.msra.mxu0 %v1330
          %1479 = vmatpush.msra.mxu0 %v1328
          %1480 = vmatpush.msra.mxu0 %v1326
          %1481 = vmatpush.msra.mxu0 %v1324
          %1482 = vmatpush.msra.mxu0 %v1322
          %1483 = vmatpush.msra.mxu0 %v1320
          %1484 = vmatpush.msra.mxu0 %v1318
          %1485 = vmatpush.msra.mxu0 %v1316
          %1486 = vmatpush.msra.mxu0 %v1314
          %1487 = vmatpush.msra.mxu0 %v1312
          %1488 = vmatpush.msra.mxu0 %v1310
          %1489 = vmatmul.f32.gmra.mxu0 %v1469
          %v1490 = vpop.f32.mrf.mxu0
          %v1491 = vadd.f32 0.0, %v1490
          %1492 = vdwg.mxu0
          %1493 = vmatpush.msra.mxu0 %v1372
          %1494 = vmatpush.msra.mxu0 %v1370
          %1495 = vmatpush.msra.mxu0 %v1368
          %1496 = vmatpush.msra.mxu0 %v1366
          %1497 = vmatpush.msra.mxu0 %v1364
          %1498 = vmatpush.msra.mxu0 %v1362
          %1499 = vmatpush.msra.mxu0 %v1360
          %1500 = vmatpush.msra.mxu0 %v1358
          %1501 = vmatpush.msra.mxu0 %v1356
          %1502 = vmatpush.msra.mxu0 %v1354
          %1503 = vmatpush.msra.mxu0 %v1352
          %1504 = vmatpush.msra.mxu0 %v1350
          %1505 = vmatpush.msra.mxu0 %v1348
          %1506 = vmatpush.msra.mxu0 %v1346
          %1507 = vmatpush.msra.mxu0 %v1344
          %1508 = vmatpush.msra.mxu0 %v1342
          %1509 = vmatmul.f32.gmra.mxu0 %v1470
          %v1510 = vpop.f32.mrf.mxu0
          %v1511 = vadd.f32 %v1491, %v1510
          %1512 = vdwg.mxu0
          %1513 = vmatpush.msra.mxu0 %v1341
          %1514 = vmatpush.msra.mxu0 %v1339
          %1515 = vmatpush.msra.mxu0 %v1337
          %1516 = vmatpush.msra.mxu0 %v1335
          %1517 = vmatpush.msra.mxu0 %v1333
          %1518 = vmatpush.msra.mxu0 %v1331
          %1519 = vmatpush.msra.mxu0 %v1329
          %1520 = vmatpush.msra.mxu0 %v1327
          %1521 = vmatpush.msra.mxu0 %v1325
          %1522 = vmatpush.msra.mxu0 %v1323
          %1523 = vmatpush.msra.mxu0 %v1321
          %1524 = vmatpush.msra.mxu0 %v1319
          %1525 = vmatpush.msra.mxu0 %v1317
          %1526 = vmatpush.msra.mxu0 %v1315
          %1527 = vmatpush.msra.mxu0 %v1313
          %1528 = vmatpush.msra.mxu0 %v1311
          %1529 = vmatmul.f32.gmra.mxu0 %v1469
          %v1530 = vpop.f32.mrf.mxu0
          %v1531 = vadd.f32 0.0, %v1530
          %1532 = vdwg.mxu0
          %1533 = vmatpush.msra.mxu0 %v1373
          %1534 = vmatpush.msra.mxu0 %v1371
          %1535 = vmatpush.msra.mxu0 %v1369
          %1536 = vmatpush.msra.mxu0 %v1367
          %1537 = vmatpush.msra.mxu0 %v1365
          %1538 = vmatpush.msra.mxu0 %v1363
          %1539 = vmatpush.msra.mxu0 %v1361
          %1540 = vmatpush.msra.mxu0 %v1359
          %1541 = vmatpush.msra.mxu0 %v1357
          %1542 = vmatpush.msra.mxu0 %v1355
          %1543 = vmatpush.msra.mxu0 %v1353
          %1544 = vmatpush.msra.mxu0 %v1351
          %1545 = vmatpush.msra.mxu0 %v1349
          %1546 = vmatpush.msra.mxu0 %v1347
          %1547 = vmatpush.msra.mxu0 %v1345
          %1548 = vmatpush.msra.mxu0 %v1343
          %1549 = vmatmul.f32.gmra.mxu0 %v1470
          %v1550 = vpop.f32.mrf.mxu0
          %v1551 = vadd.f32 %v1531, %v1550
          %1552 = vdwg.mxu0
          %v1553 = vmul.f32 %v1511, %v1465
          %v1554 = vmul.f32 %v1551, %v1465
          %v1555 = vmul.f32 %v1466, %v1466
          %v1556 = vmul.f32 %v1467, %v1467
          %v1557 = vsub.f32 %v1553, %v1555
          %v1558 = vsub.f32 %v1554, %v1556
          %v1559 = vmax.f32 %v1557, 0.0
          %v1560 = vmax.f32 %v1558, 0.0
          %v1561 = vadd.f32 %v1559, 1e-05
          %v1562 = vadd.f32 %v1560, 1e-05
          %v1563 = vrsqrt.pop %v1561
          %v1564 = vmul.f32 %v1563, %v1561
          %v1565 = vmul.f32 %v1564, %v1563
          %v1566 = vmul.f32 0.5, %v1565
          %v1567 = vsub.f32 1.5, %v1566
          %v1568 = vmul.f32 %v1563, %v1567
          %vm1569 = vweird.f32 %v1561
          %vm1570 = vweird.f32 %v1563
          %vm1571 = vmor %vm1569, %vm1570
          %v1572 = vsel %vm1571, %v1563, %v1568
          %v1573 = vrsqrt.pop %v1562
          %v1574 = vmul.f32 %v1573, %v1562
          %v1575 = vmul.f32 %v1574, %v1573
          %v1576 = vmul.f32 0.5, %v1575
          %v1577 = vsub.f32 1.5, %v1576
          %v1578 = vmul.f32 %v1573, %v1577
          %vm1579 = vweird.f32 %v1562
          %vm1580 = vweird.f32 %v1573
          %vm1581 = vmor %vm1579, %vm1580
          %v1582 = vsel %vm1581, %v1573, %v1578
          %v1583 = vld [vmem:[%s10] sm:$0x3]
          %v1585 = vperm.slane %v1583, 0
          %v1586 = vperm.slane %v1583, 1
          %v1589 = vmul.f32 %v1572, %v1585
          %v1590 = vmul.f32 %v1582, %v1586
          %v1591 = vld [vmem:[%s11] sm:$0x3]
          %v1592 = vmul.f32 %v1466, %v1589
          %v1593 = vmul.f32 %v1467, %v1590
          %v1596 = vrot.slane %v1593, 7
          %vm1597 = vcmask 1040384
          %v1598 = vsel %vm1597, %v1592, %v1596
          %v1600 = vsub.f32 %v1591, %v1598
          %v1603 = vrot.slane %v1590, 7
          %v1604 = vsel %vm1597, %v1589, %v1603
          %v1606 = vlaneseq
          %vm1607 = vcmp.ge.s32.totalorder %v1606, 0
          %vm1608 = vcmp.lt.s32.totalorder %v1606, 256
          %vm1609 = vmand %vm1607, %vm1608
          %1610 = vst.msk [vmem:[#allocation7] ss:$2 sm:$0x3] %vm1609, %v1604
          %1611 = vst.msk [vmem:[%s1308] ss:$2 sm:$0x3] %vm1609, %v1600
        $region112: #{tpu_custom_call.1} parent=67 // pred_fallthru
          _
        // Predicated region
        $region113: #{tpu_custom_call.1} parent=67 // pred_check
          %p1612 = pneg %p1302
        $region114: #{tpu_custom_call.1} parent=67 // pred_check_branch
          %1614 = sbr.rel (%p1612) target = $region116
        $region115: #{tpu_custom_call.1} parent=67 // pred_region
          %v1615 = vld [vmem:[#allocation7] ss:$2 sm:$0x3]
          %s1616 = scalar_lea.vmem [#allocation7], 1
          %v1617 = vld [vmem:[%s1616] ss:$2 sm:$0x3]
          %s1618 = smul.u32 %s34, 4
          %s1619 = smul.addr %s1618, 8
          %s1620 = scalar_lea.vmem [#allocation4], %s1619
          %v1621 = vld [vmem:[%s1620] sm:$0xff]
          %v1622 = vld [vmem:[%s1620 + $0x8] sm:$0xff]
          %v1623 = vld [vmem:[%s1620 + $0x10] sm:$0xff]
          %v1624 = vld [vmem:[%s1620 + $0x18] sm:$0xff]
          %v1626 = vperm.slane %v1615, 0
          %v1627 = vperm.slane %v1615, 1
          %v1630 = vmul.f32 %v1621, %v1626
          %v1631 = vmul.f32 %v1622, %v1627
          %v1632 = vmul.f32 %v1623, %v1626
          %v1633 = vmul.f32 %v1624, %v1627
          %v1635 = vperm.slane %v1617, 0
          %v1636 = vperm.slane %v1617, 1
          %v1639 = vadd.f32 %v1630, %v1635
          %v1640 = vadd.f32 %v1631, %v1636
          %v1641 = vadd.f32 %v1632, %v1635
          %v1642 = vadd.f32 %v1633, %v1636
          %v1643 = vld [vmem:[%s518] sm:$0xff]
          %v1644 = vld [vmem:[%s518 + $0x8] sm:$0xff]
          %v1645 = vunpack.c.l.bf16 %v1643
          %v1646 = vunpack.c.h.bf16 %v1643
          %v1647 = vunpack.c.l.bf16 %v1644
          %v1648 = vunpack.c.h.bf16 %v1644
          %v1649 = vadd.f32 %v1639, %v1645
          %v1650 = vadd.f32 %v1640, %v1646
          %v1651 = vadd.f32 %v1641, %v1647
          %v1652 = vadd.f32 %v1642, %v1648
          %v1653 = vmax.f32 %v1649, 0.0
          %v1654 = vmax.f32 %v1650, 0.0
          %v1655 = vmax.f32 %v1651, 0.0
          %v1656 = vmax.f32 %v1652, 0.0
          %1657 = vst [vmem:[%s508] sm:$0xff] %v1653
          %1658 = vst [vmem:[%s508 + $0x8] sm:$0xff] %v1654
          %1659 = vst [vmem:[%s508 + $0x10] sm:$0xff] %v1655
          %1660 = vst [vmem:[%s508 + $0x18] sm:$0xff] %v1656
        $region116: #{tpu_custom_call.1} parent=67 // pred_fallthru
          _
        %s1661 = sand.u32 %s318, 1
        %s1662 = scalar_lea.sflag [#allocation10], %s1661
        %s1663 = sand.u32 %s318, 1
        %s1664 = smul.addr %s1663, 32
        %s1665 = scalar_lea.vmem [#allocation16], %s1664
        // Predicated region
        $region117: #{tpu_custom_call.1} parent=67 // pred_check
          %p1666 = pneg %p328
        $region118: #{tpu_custom_call.1} parent=67 // pred_check_branch
          %1668 = sbr.rel (%p1666) target = $region120
        $region119: #{tpu_custom_call.1} parent=67 // pred_region
          %p1669 = scmp.eq.s32.totalorder %s33, 3
          %s1670 = scalar_select %p1669, %s34, 0
          %s1671 = smul.u32 2, %s1670
          %1673 = vsyncadd %s1662, 0
          %s1674 = smul.addr %s1671, 2
          %s1675 = smul.addr %s1674, 8
          %s1676 = scalar_lea.hbm %s12, %s1675
          %s1677 = sshll.u32 %s1665, 4
          %s1678 = int_to_ptr.vmem [resolvable:$true] %s1677
          %s1679 = sshll.u32 %s1676, 4
          %s1680 = int_to_ptr.hbm [resolvable:$true] %s1679
          %1685 = dma.vmem_to_hbm [thread:$0]  %s1678, 512, %s1680, %s1662, 256, 256, 16
        $region120: #{tpu_custom_call.1} parent=67 // pred_fallthru
          _
      $region68: #{tpu_custom_call.1} parent=5 // pred_fallthru
        _
      %p1686 = scmp.le.s32.totalorder 2, %s24
      // Predicated region
      $region121: #{tpu_custom_call.1} parent=5 // pred_check
        %p1687 = pneg %p1686
      $region122: #{tpu_custom_call.1} parent=5 // pred_check_branch
        %1689 = sbr.rel (%p1687) target = $region124
      $region123: #{tpu_custom_call.1} parent=5 // pred_region
        %s1690 = ssub.s32 %s24, 2
        // Predicated region
        $region125: #{tpu_custom_call.1} parent=123 // pred_check
          %p1691 = pneg %p334
        $region126: #{tpu_custom_call.1} parent=123 // pred_check_branch
          %1693 = sbr.rel (%p1691) target = $region128
        $region127: #{tpu_custom_call.1} parent=123 // pred_region
          %s1694 = sand.u32 %s319, 1
          %s1695 = scalar_lea.sflag [#allocation10], %s1694
          %s1696 = sand.u32 %s319, 1
          %s1697 = smul.addr %s1696, 32
          %s1698 = scalar_lea.vmem [#allocation16], %s1697
          %1700 = dma.done %s1695, 512
        $region128: #{tpu_custom_call.1} parent=123 // pred_fallthru
          _
      $region124: #{tpu_custom_call.1} parent=5 // pred_fallthru
        _
    $region6: #{tpu_custom_call.1} parent=1 // loop_footer
      %s28 = sadd.s32 1, %s24
    $region7: #{tpu_custom_call.1} parent=1 // loop_footer_branch
      %23 = sbr.rel target = $region3
    $region8: #{tpu_custom_call.1} parent=1 // loop_exit
      _
    %1701 = vsyncpa [#allocation9], 1
    %s1702 = scalar_lea.sflag [#allocation9], 1
    %1703 = vsyncpa %s1702, 1
    %1704 = vsyncpa [#allocation12], 1
    %1705 = vsyncpa [#allocation15], 1
    %1706 = vsyncpa [#allocation10], 1
    %s1707 = scalar_lea.sflag [#allocation10], 1
    %1708 = vsyncpa %s1707, 1

</llo_original>
